<compile_context>
chip_gen: v6e
topology: v6e:2x2x1
jax: 0.10.0
libtpu: 0.0.40
codegen_flags: <defaults>
</compile_context>

<pallas_src>
import math

import jax
import jax.numpy as jnp
from jax import lax
from jax.experimental import pallas as pl
from jax.experimental.pallas import tpu as pltpu


def _sgns_kernel(src_ref, ctx_ref, lab_ref, embt_ref, wbt_ref, out_ref):
    # src/ctx : (1, TM) int32      lab : (1, TM) f32
    # embt    : (D+1, N) f32  == [emb^T ; ones]     (resident across the grid)
    # wbt     : (D+1, N) f32  == [cls_w^T ; cls_b]  (resident across the grid)
    # out     : (1, TM) f32 per-element BCE-with-logits loss (lane-dense)
    tm = src_ref.shape[1]
    n = embt_ref.shape[1]
    iota_n = lax.broadcasted_iota(jnp.int32, (n, tm), 0)

    onehot_src = (iota_n == src_ref[...]).astype(jnp.float32)        # (N, TM)
    onehot_ctx = (iota_n == ctx_ref[...]).astype(jnp.float32)        # (N, TM)

    # Exact row gathers as MXU matmuls, lane-dense along TM.
    xt = jnp.dot(embt_ref[...], onehot_src,
                 preferred_element_type=jnp.float32,
                 precision=lax.Precision.HIGHEST)                    # (D+1, TM)
    wt = jnp.dot(wbt_ref[...], onehot_ctx,
                 preferred_element_type=jnp.float32,
                 precision=lax.Precision.HIGHEST)                    # (D+1, TM)

    # z_i = <E[src_i], W[ctx_i]> + b[ctx_i]; the bias rides in the last row
    # (ones row * bias row), so no separate bias gather / lane reduction.
    z = jnp.sum(xt * wt, axis=0, keepdims=True)                      # (1, TM)

    # BCEWithLogitsLoss per element: max(z,0) - z*y + log1p(exp(-|z|)),
    # evaluated on a lane-dense (1, TM) row (full VPU/EUP lane occupancy).
    y = lab_ref[...]
    u = jnp.exp(-jnp.abs(z))
    one_plus = 1.0 + u
    # Accurate log1p(u) using only log (Kahan's formula): avoids the
    # underflow of log(1 + u) for tiny u (confident logits).
    denom = jnp.where(one_plus == 1.0, 1.0, one_plus - 1.0)
    log1p_u = jnp.where(one_plus == 1.0, u, jnp.log(one_plus) * u / denom)
    out_ref[...] = jnp.maximum(z, 0.0) - z * y + log1p_u


def _estimate_vmem_limit_bytes(n, d_aug, tile_m):
    """Scoped-VMEM limit from the actual block footprint (+ headroom)."""
    f32 = 4
    pad8 = lambda r: ((r + 7) // 8) * 8
    rows = 4 * 2 * pad8(1) * tile_m * f32           # src/ctx/lab/out blocks, double-buffered
    tables = 2 * 2 * pad8(d_aug) * n * f32          # two resident tables (2 buffers each)
    onehot = 2 * pad8(n) * tile_m * f32             # two (N, TM) one-hot intermediates
    interm = (2 * pad8(d_aug) + 4 * 8) * tile_m * f32   # gathered tiles + epilogue temps
    est = rows + tables + onehot + interm
    # 2x headroom for compiler scratch / vreg spills; clamp to v7x's 64 MiB.
    return int(min(64 * 1024 * 1024, max(4 * 1024 * 1024, 2 * est)))


def sgns_forward(source_nodes, context_nodes, labels, emb, cls_w, cls_b,
                 *, tile_m=256):
    """Scalar BCEWithLogits loss, matching SkipGramNegativeSamplingModel.forward."""
    B, L = source_nodes.shape
    N, D = emb.shape
    M = B * L

    # Keep >= 2 grid programs when there is enough work (v7x shards the
    # "parallel" grid axis over its 2 TensorCores), but never shrink a tile
    # below the 128-row MXU/lane granule.
    tile_m = max(128, min(tile_m, pl.next_power_of_2(pl.cdiv(M, 2))))
    n_tiles = pl.cdiv(M, tile_m)
    m_pad = n_tiles * tile_m

    src = source_nodes.reshape(M).astype(jnp.int32)
    ctx = context_nodes.reshape(M).astype(jnp.int32)
    lab = labels.reshape(M).astype(jnp.float32)
    pad = m_pad - M
    if pad:
        # Padded rows use index 0 (always valid) and are sliced away below,
        # so they contribute nothing to the loss.
        src = jnp.pad(src, (0, pad))
        ctx = jnp.pad(ctx, (0, pad))
        lab = jnp.pad(lab, (0, pad))
    src = src.reshape(n_tiles, tile_m)
    ctx = ctx.reshape(n_tiles, tile_m)
    lab = lab.reshape(n_tiles, tile_m)

    # Transposed, bias-augmented tables: lane-dense along N, bias folded into
    # the same MXU matmul that gathers W[ctx].
    d_aug = D + 1
    ones_row = jnp.ones((1, N), jnp.float32)
    emb_t = jnp.concatenate([emb.T.astype(jnp.float32), ones_row], axis=0)      # (D+1, N)
    wbt = jnp.concatenate([cls_w.T.astype(jnp.float32),
                           cls_b.reshape(1, N).astype(jnp.float32)], axis=0)    # (D+1, N)

    vmem_limit = _estimate_vmem_limit_bytes(N, d_aug, tile_m)

    per_elem = pl.pallas_call(
        _sgns_kernel,
        out_shape=jax.ShapeDtypeStruct((n_tiles, tile_m), jnp.float32),
        grid=(n_tiles,),
        in_specs=[
            pl.BlockSpec((1, tile_m), lambda i: (i, 0)),     # src indices
            pl.BlockSpec((1, tile_m), lambda i: (i, 0)),     # ctx indices
            pl.BlockSpec((1, tile_m), lambda i: (i, 0)),     # labels
            pl.BlockSpec((d_aug, N), lambda i: (0, 0)),      # [emb^T ; 1]   (resident)
            pl.BlockSpec((d_aug, N), lambda i: (0, 0)),      # [W^T  ; b]    (resident)
        ],
        out_specs=pl.BlockSpec((1, tile_m), lambda i: (i, 0)),
        compiler_params=pltpu.CompilerParams(
            dimension_semantics=("parallel",),
            vmem_limit_bytes=vmem_limit,
        ),
    )(src, ctx, lab, emb_t, wbt)

    # Mean over the M valid elements (padded rows discarded); tree reduction
    # in the wrapper over a lane-dense slab.
    return jnp.sum(per_elem.reshape(-1)[:M]) / M


def _reference_loss(source_nodes, context_nodes, labels, emb, cls_w, cls_b):
    x = emb[source_nodes]                                  # (B, L, D)
    logits = jnp.einsum("bld,nd->bln", x, cls_w,
                        precision=lax.Precision.HIGHEST) + cls_b
    z = jnp.take_along_axis(logits, context_nodes[..., None], axis=2)[..., 0]
    y = labels.astype(jnp.float32)
    per = jnp.maximum(z, 0.0) - z * y + jnp.log1p(jnp.exp(-jnp.abs(z)))
    return jnp.mean(per)


if __name__ == "__main__":
    key = jax.random.PRNGKey(0)

    # Module hyper-params (small, synthetic).
    nodes_num = 128       # N
    embedding_dim = 32    # D
    B, L = 2, 8           # source/context node batch shape

    k_emb, k_w, k_b, k_src, k_ctx, k_lab = jax.random.split(key, 6)

    # Xavier-uniform init (fan_in=D, fan_out=N for both (N, D) weights).
    bound = math.sqrt(6.0 / (nodes_num + embedding_dim))
    emb = jax.random.uniform(k_emb, (nodes_num, embedding_dim),
                             jnp.float32, -bound, bound)
    cls_w = jax.random.uniform(k_w, (nodes_num, embedding_dim),
                               jnp.float32, -bound, bound)
    # nn.Linear default bias init: U(-1/sqrt(fan_in), 1/sqrt(fan_in)).
    b_bound = 1.0 / math.sqrt(embedding_dim)
    cls_b = jax.random.uniform(k_b, (nodes_num,), jnp.float32, -b_bound, b_bound)

    source_nodes = jax.random.randint(k_src, (B, L), 0, nodes_num, jnp.int32)
    context_nodes = jax.random.randint(k_ctx, (B, L), 0, nodes_num, jnp.int32)
    labels = jax.random.bernoulli(k_lab, 0.5, (B, L)).astype(jnp.int32)

    loss = sgns_forward(source_nodes, context_nodes, labels, emb, cls_w, cls_b)
    loss = jax.block_until_ready(loss)

    ref = _reference_loss(source_nodes, context_nodes, labels, emb, cls_w, cls_b)
    assert jnp.allclose(loss, ref, rtol=1e-5, atol=1e-5), (loss, ref)

    print("KERNEL_OK")
</pallas_src>

<mosaic_0001>
module attributes {stable_mosaic.version = 11 : i64} {
  func.func @_sgns_kernel(%arg0: i32, %arg1: memref<1x128xi32, #tpu.memory_space<vmem>>, %arg2: memref<1x128xi32, #tpu.memory_space<vmem>>, %arg3: memref<1x128xf32, #tpu.memory_space<vmem>>, %arg4: memref<33x128xf32, #tpu.memory_space<vmem>>, %arg5: memref<33x128xf32, #tpu.memory_space<vmem>>, %arg6: memref<1x128xf32, #tpu.memory_space<vmem>>) attributes {dimension_semantics = [#tpu.dimension_semantics<parallel>], iteration_bounds = array<i64: 1>, scalar_prefetch = 0 : i64, scratch_operands = 0 : i64, tpu.core_type = #tpu.core_type<tc>, window_params = [{transform_indices = @transform_0, window_bounds = array<i64: 1, 128>}, {transform_indices = @transform_1, window_bounds = array<i64: 1, 128>}, {transform_indices = @transform_2, window_bounds = array<i64: 1, 128>}, {pipeline_mode = #tpu.pipeline_mode<synchronous>, transform_indices = @transform_3, window_bounds = array<i64: 33, 128>}, {pipeline_mode = #tpu.pipeline_mode<synchronous>, transform_indices = @transform_4, window_bounds = array<i64: 33, 128>}, {transform_indices = @transform_5, window_bounds = array<i64: 1, 128>}]} {
    %0 = tpu.iota {dimensions = array<i32: 0>} : vector<128x128xi32>
    %c0 = arith.constant 0 : index
    %c0_0 = arith.constant 0 : index
    %1 = vector.load %arg1[%c0, %c0_0] : memref<1x128xi32, #tpu.memory_space<vmem>>, vector<1x128xi32>
    %2 = vector.broadcast %1 : vector<1x128xi32> to vector<128x128xi32>
    %3 = arith.cmpi eq, %0, %2 : vector<128x128xi32>
    %4 = arith.extui %3 : vector<128x128xi1> to vector<128x128xi32>
    %5 = arith.sitofp %4 : vector<128x128xi32> to vector<128x128xf32>
    %c0_1 = arith.constant 0 : index
    %c0_2 = arith.constant 0 : index
    %6 = vector.load %arg2[%c0_1, %c0_2] : memref<1x128xi32, #tpu.memory_space<vmem>>, vector<1x128xi32>
    %7 = vector.broadcast %6 : vector<1x128xi32> to vector<128x128xi32>
    %8 = arith.cmpi eq, %0, %7 : vector<128x128xi32>
    %9 = arith.extui %8 : vector<128x128xi1> to vector<128x128xi32>
    %10 = arith.sitofp %9 : vector<128x128xi32> to vector<128x128xf32>
    %c0_3 = arith.constant 0 : index
    %c0_4 = arith.constant 0 : index
    %11 = vector.load %arg4[%c0_3, %c0_4] : memref<33x128xf32, #tpu.memory_space<vmem>>, vector<33x128xf32>
    %cst = arith.constant dense<0.000000e+00> : vector<33x128xf32>
    %12 = tpu.matmul %11, %5, %cst {dimension_numbers = #tpu.dot_dimension_numbers<[1], [0], [0], [1], [0, 0, 1, 1], [], []>, precision = #tpu.contract_precision<fp32>} : vector<33x128xf32>, vector<128x128xf32>, vector<33x128xf32> -> vector<33x128xf32>
    %c0_5 = arith.constant 0 : index
    %c0_6 = arith.constant 0 : index
    %13 = vector.load %arg5[%c0_5, %c0_6] : memref<33x128xf32, #tpu.memory_space<vmem>>, vector<33x128xf32>
    %cst_7 = arith.constant dense<0.000000e+00> : vector<33x128xf32>
    %14 = tpu.matmul %13, %10, %cst_7 {dimension_numbers = #tpu.dot_dimension_numbers<[1], [0], [0], [1], [0, 0, 1, 1], [], []>, precision = #tpu.contract_precision<fp32>} : vector<33x128xf32>, vector<128x128xf32>, vector<33x128xf32> -> vector<33x128xf32>
    %15 = arith.mulf %12, %14 : vector<33x128xf32>
    %cst_8 = arith.constant dense<0.000000e+00> : vector<128xf32>
    %16 = vector.multi_reduction <add>, %15, %cst_8 [0] : vector<33x128xf32> to vector<128xf32>
    %17 = vector.shape_cast %16 : vector<128xf32> to vector<1x128xf32>
    %c0_9 = arith.constant 0 : index
    %c0_10 = arith.constant 0 : index
    %18 = vector.load %arg3[%c0_9, %c0_10] : memref<1x128xf32, #tpu.memory_space<vmem>>, vector<1x128xf32>
    %19 = math.absf %17 : vector<1x128xf32>
    %cst_11 = arith.constant 0.000000e+00 : f32
    %20 = vector.broadcast %cst_11 : f32 to vector<1x128xf32>
    %21 = arith.subf %20, %19 : vector<1x128xf32>
    %22 = math.exp %21 : vector<1x128xf32>
    %cst_12 = arith.constant 1.000000e+00 : f32
    %23 = vector.broadcast %cst_12 : f32 to vector<1x128xf32>
    %24 = arith.addf %23, %22 : vector<1x128xf32>
    %cst_13 = arith.constant 1.000000e+00 : f32
    %25 = vector.broadcast %cst_13 : f32 to vector<1x128xf32>
    %26 = arith.cmpf oeq, %24, %25 : vector<1x128xf32>
    %cst_14 = arith.constant 1.000000e+00 : f32
    %27 = vector.broadcast %cst_14 : f32 to vector<1x128xf32>
    %28 = arith.subf %24, %27 : vector<1x128xf32>
    %cst_15 = arith.constant 1.000000e+00 : f32
    %29 = vector.broadcast %cst_15 : f32 to vector<1x128xf32>
    %30 = arith.select %26, %29, %28 : vector<1x128xi1>, vector<1x128xf32>
    %cst_16 = arith.constant 1.000000e+00 : f32
    %31 = vector.broadcast %cst_16 : f32 to vector<1x128xf32>
    %32 = arith.cmpf oeq, %24, %31 : vector<1x128xf32>
    %33 = math.log %24 : vector<1x128xf32>
    %34 = arith.mulf %33, %22 : vector<1x128xf32>
    %35 = arith.divf %34, %30 : vector<1x128xf32>
    %36 = arith.select %32, %22, %35 : vector<1x128xi1>, vector<1x128xf32>
    %cst_17 = arith.constant 0.000000e+00 : f32
    %37 = vector.broadcast %cst_17 : f32 to vector<1x128xf32>
    %38 = arith.maximumf %17, %37 : vector<1x128xf32>
    %39 = arith.mulf %17, %18 : vector<1x128xf32>
    %40 = arith.subf %38, %39 : vector<1x128xf32>
    %41 = arith.addf %40, %36 : vector<1x128xf32>
    %c0_18 = arith.constant 0 : index
    %c0_19 = arith.constant 0 : index
    %42 = vector.load %arg6[%c0_18, %c0_19] : memref<1x128xf32, #tpu.memory_space<vmem>>, vector<1x128xf32>
    tpu.vector_store %arg6[%c0_18, %c0_19], %41 {strides = array<i32>} : memref<1x128xf32, #tpu.memory_space<vmem>>, vector<1x128xf32>,
    return
  }
  func.func @transform_0(%arg0: i32) -> (i32, i32) {
    %c0_i32 = arith.constant 0 : i32
    %c0_i32_0 = arith.constant 0 : i32
    return %arg0, %c0_i32 : i32, i32
  }
  func.func @transform_1(%arg0: i32) -> (i32, i32) {
    %c0_i32 = arith.constant 0 : i32
    %c0_i32_0 = arith.constant 0 : i32
    return %arg0, %c0_i32 : i32, i32
  }
  func.func @transform_2(%arg0: i32) -> (i32, i32) {
    %c0_i32 = arith.constant 0 : i32
    %c0_i32_0 = arith.constant 0 : i32
    return %arg0, %c0_i32 : i32, i32
  }
  func.func @transform_3(%arg0: i32) -> (i32, i32) {
    %c0_i32 = arith.constant 0 : i32
    %c0_i32_0 = arith.constant 0 : i32
    %c0_i32_1 = arith.constant 0 : i32
    return %c0_i32, %c0_i32_0 : i32, i32
  }
  func.func @transform_4(%arg0: i32) -> (i32, i32) {
    %c0_i32 = arith.constant 0 : i32
    %c0_i32_0 = arith.constant 0 : i32
    %c0_i32_1 = arith.constant 0 : i32
    return %c0_i32, %c0_i32_0 : i32, i32
  }
  func.func @transform_5(%arg0: i32) -> (i32, i32) {
    %c0_i32 = arith.constant 0 : i32
    %c0_i32_0 = arith.constant 0 : i32
    return %arg0, %c0_i32 : i32, i32
  }
}

</mosaic_0001>

<llo_original>
// kernel: tpu_custom_call.1
$region0: #{tpu_custom_call.1}
  #allocation0 [shape = 'u32[]', space=smem, size = 0x4, offset = 0x4, fixed_abs, tag = 'smem constant byte address 0x4 - core index']
  #allocation1 [shape = 'u32[144,128]{1,0:T(1,128)}', space=vmem, size = 0x12000, scoped, tag = 'internal scratch']
  %s0 = inlined_call_operand.hbm [shape: s32[1,128], index: 0, kind: input, shape index: {}]
  %s1 = inlined_call_operand.vmem [shape: s32[1,128], index: 1, kind: input, shape index: {}]
  %s2 = inlined_call_operand.vmem [shape: f32[1,128], index: 2, kind: input, shape index: {}]
  %s3 = inlined_call_operand.hbm [shape: f32[33,128], index: 3, kind: input, shape index: {}]
  %s4 = inlined_call_operand.hbm [shape: f32[33,128], index: 4, kind: input, shape index: {}]
  %s5 = inlined_call_operand.hbm [shape: f32[1,128], index: 5, kind: output, shape index: {}]
  %s6 = sld [smem:[#allocation0]]
  $region42: #{tpu_custom_call.1} parent=0
    _
  %s8 = ssub.s32 1, %s6
  %s9 = scalar_select 0, %s8, %s6
  $region1: #{tpu_custom_call.1} parent=0
    #allocation2 [shape = 'u8[512]{0}', space=vmem, size = 0x400, scoped, tag = 'input window, operand 0, single buffered']
    #allocation3 [shape = 's32[1]{0}', space=sflag, size = 0x4, scoped, tag = 'scoped memory for tpu_custom_call.1']
    #allocation4 [shape = 's32[1]{0}', space=sflag, size = 0x4, scoped, tag = 'scoped memory for tpu_custom_call.1']
    #allocation5 [shape = 'u8[20480]{0}', space=vmem, size = 0x5000, scoped, tag = 'input window, operand 3, single buffered']
    #allocation6 [shape = 's32[1]{0}', space=sflag, size = 0x4, scoped, tag = 'scoped memory for tpu_custom_call.1']
    #allocation7 [shape = 'u8[20480]{0}', space=vmem, size = 0x5000, scoped, tag = 'input window, operand 4, single buffered']
    #allocation8 [shape = 'u8[512]{0}', space=vmem, size = 0x400, scoped, tag = 'output window, operand 0, single buffered']
    %10 = vsyncpa [#allocation3], 0
    %11 = vsyncpa [#allocation6], 0
    %12 = vsyncpa [#allocation4], 0
    // Predicated region
    $region2: #{tpu_custom_call.1} parent=1 // pred_check
      _
    $region3: #{tpu_custom_call.1} parent=1 // pred_check_branch
      %14 = sbr.rel (0) target = $region5
    $region4: #{tpu_custom_call.1} parent=1 // pred_region
      %s16 = ssub.s32 16, 16
      %17 = vsyncadd [#allocation3], %s16
      %s19 = sshll.u32 [#allocation2], 4
      %s20 = int_to_ptr.vmem [resolvable:$true] %s19
      %22 = dma.hbm_to_vmem [thread:$0]  %s0, 16, %s20, [#allocation3]
    $region5: #{tpu_custom_call.1} parent=1 // pred_fallthru
      _
    // Predicated region
    $region6: #{tpu_custom_call.1} parent=1 // pred_check
      _
    $region7: #{tpu_custom_call.1} parent=1 // pred_check_branch
      %24 = sbr.rel (0) target = $region9
    $region8: #{tpu_custom_call.1} parent=1 // pred_region
      _
    $region9: #{tpu_custom_call.1} parent=1 // pred_fallthru
      _
    // Predicated region
    $region10: #{tpu_custom_call.1} parent=1 // pred_check
      _
    $region11: #{tpu_custom_call.1} parent=1 // pred_check_branch
      %26 = sbr.rel (0) target = $region13
    $region12: #{tpu_custom_call.1} parent=1 // pred_region
      _
    $region13: #{tpu_custom_call.1} parent=1 // pred_fallthru
      _
    // Predicated region
    $region14: #{tpu_custom_call.1} parent=1 // pred_check
      _
    $region15: #{tpu_custom_call.1} parent=1 // pred_check_branch
      %28 = sbr.rel (0) target = $region17
    $region16: #{tpu_custom_call.1} parent=1 // pred_region
      %s30 = ssub.s32 640, 640
      %31 = vsyncadd [#allocation6], %s30
      %s32 = sshll.u32 [#allocation5], 4
      %s33 = int_to_ptr.vmem [resolvable:$true] %s32
      %38 = dma.hbm_to_vmem [thread:$0]  %s3, 640, %s33, [#allocation6], 128, 128, 8
    $region17: #{tpu_custom_call.1} parent=1 // pred_fallthru
      _
    // Predicated region
    $region18: #{tpu_custom_call.1} parent=1 // pred_check
      _
    $region19: #{tpu_custom_call.1} parent=1 // pred_check_branch
      %40 = sbr.rel (0) target = $region21
    $region20: #{tpu_custom_call.1} parent=1 // pred_region
      %s42 = ssub.s32 640, 640
      %43 = vsyncadd [#allocation6], %s42
      %s44 = sshll.u32 [#allocation7], 4
      %s45 = int_to_ptr.vmem [resolvable:$true] %s44
      %50 = dma.hbm_to_vmem [thread:$0]  %s4, 640, %s45, [#allocation6], 128, 128, 8
    $region21: #{tpu_custom_call.1} parent=1 // pred_fallthru
      _
    // Predicated region
    $region22: #{tpu_custom_call.1} parent=1 // pred_check
      _
    $region23: #{tpu_custom_call.1} parent=1 // pred_check_branch
      %52 = sbr.rel (0) target = $region25
    $region24: #{tpu_custom_call.1} parent=1 // pred_region
      %53 = dma.done [#allocation3], 16
    $region25: #{tpu_custom_call.1} parent=1 // pred_fallthru
      _
    // Predicated region
    $region26: #{tpu_custom_call.1} parent=1 // pred_check
      _
    $region27: #{tpu_custom_call.1} parent=1 // pred_check_branch
      %55 = sbr.rel (0) target = $region29
    $region28: #{tpu_custom_call.1} parent=1 // pred_region
      %56 = dma.done [#allocation6], 640
    $region29: #{tpu_custom_call.1} parent=1 // pred_fallthru
      _
    // Predicated region
    $region30: #{tpu_custom_call.1} parent=1 // pred_check
      _
    $region31: #{tpu_custom_call.1} parent=1 // pred_check_branch
      %58 = sbr.rel (0) target = $region33
    $region32: #{tpu_custom_call.1} parent=1 // pred_region
      %59 = dma.done [#allocation6], 640
    $region33: #{tpu_custom_call.1} parent=1 // pred_fallthru
      _
    %v60 = vlaneseq
    %v61 = vshrl.u32 %v60, 7
    %v62 = vadd.s32 %v61, 8
    %v63 = vadd.s32 %v61, 16
    %v64 = vadd.s32 %v61, 24
    %v65 = vadd.s32 %v61, 32
    %v66 = vadd.s32 %v61, 40
    %v67 = vadd.s32 %v61, 48
    %v68 = vadd.s32 %v61, 56
    %v69 = vadd.s32 %v61, 64
    %v70 = vadd.s32 %v61, 72
    %v71 = vadd.s32 %v61, 80
    %v72 = vadd.s32 %v61, 88
    %v73 = vadd.s32 %v61, 96
    %v74 = vadd.s32 %v61, 104
    %v75 = vadd.s32 %v61, 112
    %v76 = vadd.s32 %v61, 120
    %v77 = vld [vmem:[#allocation2] sm:$0x1]
    %v78 = vlaneseq
    %v79 = vshrl.u32 %v78, 7
    %v80 = vsub.s32 0, %v79
    %v81 = vrot.slane %v77, %v80
    %vm82 = vcmp.eq.s32.totalorder %v61, %v81
    %vm83 = vcmp.eq.s32.totalorder %v62, %v81
    %vm84 = vcmp.eq.s32.totalorder %v63, %v81
    %vm85 = vcmp.eq.s32.totalorder %v64, %v81
    %vm86 = vcmp.eq.s32.totalorder %v65, %v81
    %vm87 = vcmp.eq.s32.totalorder %v66, %v81
    %vm88 = vcmp.eq.s32.totalorder %v67, %v81
    %vm89 = vcmp.eq.s32.totalorder %v68, %v81
    %vm90 = vcmp.eq.s32.totalorder %v69, %v81
    %vm91 = vcmp.eq.s32.totalorder %v70, %v81
    %vm92 = vcmp.eq.s32.totalorder %v71, %v81
    %vm93 = vcmp.eq.s32.totalorder %v72, %v81
    %vm94 = vcmp.eq.s32.totalorder %v73, %v81
    %vm95 = vcmp.eq.s32.totalorder %v74, %v81
    %vm96 = vcmp.eq.s32.totalorder %v75, %v81
    %vm97 = vcmp.eq.s32.totalorder %v76, %v81
    %v98 = vsel %vm82, 1, 0
    %v99 = vsel %vm83, 1, 0
    %v100 = vsel %vm84, 1, 0
    %v101 = vsel %vm85, 1, 0
    %v102 = vsel %vm86, 1, 0
    %v103 = vsel %vm87, 1, 0
    %v104 = vsel %vm88, 1, 0
    %v105 = vsel %vm89, 1, 0
    %v106 = vsel %vm90, 1, 0
    %v107 = vsel %vm91, 1, 0
    %v108 = vsel %vm92, 1, 0
    %v109 = vsel %vm93, 1, 0
    %v110 = vsel %vm94, 1, 0
    %v111 = vsel %vm95, 1, 0
    %v112 = vsel %vm96, 1, 0
    %v113 = vsel %vm97, 1, 0
    %v114 = vcvt.s32.f32 %v98
    %v115 = vcvt.s32.f32 %v99
    %v116 = vcvt.s32.f32 %v100
    %v117 = vcvt.s32.f32 %v101
    %v118 = vcvt.s32.f32 %v102
    %v119 = vcvt.s32.f32 %v103
    %v120 = vcvt.s32.f32 %v104
    %v121 = vcvt.s32.f32 %v105
    %v122 = vcvt.s32.f32 %v106
    %v123 = vcvt.s32.f32 %v107
    %v124 = vcvt.s32.f32 %v108
    %v125 = vcvt.s32.f32 %v109
    %v126 = vcvt.s32.f32 %v110
    %v127 = vcvt.s32.f32 %v111
    %v128 = vcvt.s32.f32 %v112
    %v129 = vcvt.s32.f32 %v113
    %v130 = vld [vmem:[%s1] sm:$0x1]
    %v131 = vlaneseq
    %v132 = vshrl.u32 %v131, 7
    %v133 = vsub.s32 0, %v132
    %v134 = vrot.slane %v130, %v133
    %vm135 = vcmp.eq.s32.totalorder %v61, %v134
    %vm136 = vcmp.eq.s32.totalorder %v62, %v134
    %vm137 = vcmp.eq.s32.totalorder %v63, %v134
    %vm138 = vcmp.eq.s32.totalorder %v64, %v134
    %vm139 = vcmp.eq.s32.totalorder %v65, %v134
    %vm140 = vcmp.eq.s32.totalorder %v66, %v134
    %vm141 = vcmp.eq.s32.totalorder %v67, %v134
    %vm142 = vcmp.eq.s32.totalorder %v68, %v134
    %vm143 = vcmp.eq.s32.totalorder %v69, %v134
    %vm144 = vcmp.eq.s32.totalorder %v70, %v134
    %vm145 = vcmp.eq.s32.totalorder %v71, %v134
    %vm146 = vcmp.eq.s32.totalorder %v72, %v134
    %vm147 = vcmp.eq.s32.totalorder %v73, %v134
    %vm148 = vcmp.eq.s32.totalorder %v74, %v134
    %vm149 = vcmp.eq.s32.totalorder %v75, %v134
    %vm150 = vcmp.eq.s32.totalorder %v76, %v134
    %v151 = vsel %vm135, 1, 0
    %v152 = vsel %vm136, 1, 0
    %v153 = vsel %vm137, 1, 0
    %v154 = vsel %vm138, 1, 0
    %v155 = vsel %vm139, 1, 0
    %v156 = vsel %vm140, 1, 0
    %v157 = vsel %vm141, 1, 0
    %v158 = vsel %vm142, 1, 0
    %v159 = vsel %vm143, 1, 0
    %v160 = vsel %vm144, 1, 0
    %v161 = vsel %vm145, 1, 0
    %v162 = vsel %vm146, 1, 0
    %v163 = vsel %vm147, 1, 0
    %v164 = vsel %vm148, 1, 0
    %v165 = vsel %vm149, 1, 0
    %v166 = vsel %vm150, 1, 0
    %v167 = vcvt.s32.f32 %v151
    %v168 = vcvt.s32.f32 %v152
    %v169 = vcvt.s32.f32 %v153
    %v170 = vcvt.s32.f32 %v154
    %v171 = vcvt.s32.f32 %v155
    %v172 = vcvt.s32.f32 %v156
    %v173 = vcvt.s32.f32 %v157
    %v174 = vcvt.s32.f32 %v158
    %v175 = vcvt.s32.f32 %v159
    %v176 = vcvt.s32.f32 %v160
    %v177 = vcvt.s32.f32 %v161
    %v178 = vcvt.s32.f32 %v162
    %v179 = vcvt.s32.f32 %v163
    %v180 = vcvt.s32.f32 %v164
    %v181 = vcvt.s32.f32 %v165
    %v182 = vcvt.s32.f32 %v166
    %v183 = vld [vmem:[#allocation5] sm:$0xff]
    %v184 = vld [vmem:[#allocation5 + $0x8] sm:$0xff]
    %v185 = vld [vmem:[#allocation5 + $0x10] sm:$0xff]
    %v186 = vld [vmem:[#allocation5 + $0x18] sm:$0xff]
    %v187 = vld [vmem:[#allocation5 + $0x20] sm:$0x1]
    %188 = vmatprep.subr.mxu0 0.0
    %v189 = vand.u32 %v129, 4294901760
    %190 = vmatpush1.msra.mxu0 %v189
    %191 = vmatprep.subr.mxu0 0.0
    %v192 = vand.u32 %v128, 4294901760
    %193 = vmatpush1.msra.mxu0 %v192
    %194 = vmatprep.subr.mxu0 0.0
    %v195 = vand.u32 %v127, 4294901760
    %196 = vmatpush1.msra.mxu0 %v195
    %197 = vmatprep.subr.mxu0 0.0
    %v198 = vand.u32 %v126, 4294901760
    %199 = vmatpush1.msra.mxu0 %v198
    %200 = vmatprep.subr.mxu0 0.0
    %v201 = vand.u32 %v125, 4294901760
    %202 = vmatpush1.msra.mxu0 %v201
    %203 = vmatprep.subr.mxu0 0.0
    %v204 = vand.u32 %v124, 4294901760
    %205 = vmatpush1.msra.mxu0 %v204
    %206 = vmatprep.subr.mxu0 0.0
    %v207 = vand.u32 %v123, 4294901760
    %208 = vmatpush1.msra.mxu0 %v207
    %209 = vmatprep.subr.mxu0 0.0
    %v210 = vand.u32 %v122, 4294901760
    %211 = vmatpush1.msra.mxu0 %v210
    %212 = vmatprep.subr.mxu0 0.0
    %v213 = vand.u32 %v121, 4294901760
    %214 = vmatpush1.msra.mxu0 %v213
    %215 = vmatprep.subr.mxu0 0.0
    %v216 = vand.u32 %v120, 4294901760
    %217 = vmatpush1.msra.mxu0 %v216
    %218 = vmatprep.subr.mxu0 0.0
    %v219 = vand.u32 %v119, 4294901760
    %220 = vmatpush1.msra.mxu0 %v219
    %221 = vmatprep.subr.mxu0 0.0
    %v222 = vand.u32 %v118, 4294901760
    %223 = vmatpush1.msra.mxu0 %v222
    %224 = vmatprep.subr.mxu0 0.0
    %v225 = vand.u32 %v117, 4294901760
    %226 = vmatpush1.msra.mxu0 %v225
    %227 = vmatprep.subr.mxu0 0.0
    %v228 = vand.u32 %v116, 4294901760
    %229 = vmatpush1.msra.mxu0 %v228
    %230 = vmatprep.subr.mxu0 0.0
    %v231 = vand.u32 %v115, 4294901760
    %232 = vmatpush1.msra.mxu0 %v231
    %233 = vmatprep.subr.mxu0 0.0
    %v234 = vand.u32 %v114, 4294901760
    %235 = vmatpush1.msra.mxu0 %v234
    %236 = vmatprep.subr.mxu0 0.0
    %237 = vmatpush2.msra.mxu0 0.0
    %238 = vmatprep.subr.mxu0 0.0
    %239 = vmatpush2.msra.mxu0 0.0
    %240 = vmatprep.subr.mxu0 0.0
    %241 = vmatpush2.msra.mxu0 0.0
    %242 = vmatprep.subr.mxu0 0.0
    %243 = vmatpush2.msra.mxu0 0.0
    %244 = vmatprep.subr.mxu0 0.0
    %245 = vmatpush2.msra.mxu0 0.0
    %246 = vmatprep.subr.mxu0 0.0
    %247 = vmatpush2.msra.mxu0 0.0
    %248 = vmatprep.subr.mxu0 0.0
    %249 = vmatpush2.msra.mxu0 0.0
    %250 = vmatprep.subr.mxu0 0.0
    %251 = vmatpush2.msra.mxu0 0.0
    %252 = vmatprep.subr.mxu0 0.0
    %253 = vmatpush2.msra.mxu0 0.0
    %254 = vmatprep.subr.mxu0 0.0
    %255 = vmatpush2.msra.mxu0 0.0
    %256 = vmatprep.subr.mxu0 0.0
    %257 = vmatpush2.msra.mxu0 0.0
    %258 = vmatprep.subr.mxu0 0.0
    %259 = vmatpush2.msra.mxu0 0.0
    %260 = vmatprep.subr.mxu0 0.0
    %261 = vmatpush2.msra.mxu0 0.0
    %262 = vmatprep.subr.mxu0 0.0
    %263 = vmatpush2.msra.mxu0 0.0
    %264 = vmatprep.subr.mxu0 0.0
    %265 = vmatpush2.msra.mxu0 0.0
    %266 = vmatprep.subr.mxu0 0.0
    %267 = vmatpush2.msra.mxu0 0.0
    %268 = vmatprep.mubr.f32.mxu0 0.0
    %v269 = vand.u32 %v183, 4294901760
    %v270 = vsub.f32 %v183, %v269
    %v271 = vand.u32 %v270, 4294901760
    %v272 = vsub.f32 %v270, %v271
    %v273 = vand.u32 %v272, 4294901760
    %274 = vmatmul.mubr.f32.gmra.mxu0 %v273
    %v275 = vpop.f32.mrf.mxu0
    %v276 = vadd.f32 0.0, %v275
    %v277 = vpop.f32.mrf.mxu0
    %278 = vmatprep.mubr.f32.mxu0 0.0
    %v279 = vand.u32 %v184, 4294901760
    %v280 = vsub.f32 %v184, %v279
    %v281 = vand.u32 %v280, 4294901760
    %v282 = vsub.f32 %v280, %v281
    %v283 = vand.u32 %v282, 4294901760
    %284 = vmatmul.mubr.f32.gmra.mxu0 %v283
    %v285 = vpop.f32.mrf.mxu0
    %v286 = vadd.f32 0.0, %v285
    %v287 = vpop.f32.mrf.mxu0
    %288 = vmatprep.mubr.f32.mxu0 0.0
    %v289 = vand.u32 %v185, 4294901760
    %v290 = vsub.f32 %v185, %v289
    %v291 = vand.u32 %v290, 4294901760
    %v292 = vsub.f32 %v290, %v291
    %v293 = vand.u32 %v292, 4294901760
    %294 = vmatmul.mubr.f32.gmra.mxu0 %v293
    %v295 = vpop.f32.mrf.mxu0
    %v296 = vadd.f32 0.0, %v295
    %v297 = vpop.f32.mrf.mxu0
    %298 = vmatprep.mubr.f32.mxu0 0.0
    %v299 = vand.u32 %v186, 4294901760
    %v300 = vsub.f32 %v186, %v299
    %v301 = vand.u32 %v300, 4294901760
    %v302 = vsub.f32 %v300, %v301
    %v303 = vand.u32 %v302, 4294901760
    %304 = vmatmul.mubr.f32.gmra.mxu0 %v303
    %v305 = vpop.f32.mrf.mxu0
    %v306 = vadd.f32 0.0, %v305
    %v307 = vpop.f32.mrf.mxu0
    %308 = vmatprep.mubr.f32.mxu0 0.0
    %v309 = vand.u32 %v187, 4294901760
    %v310 = vsub.f32 %v187, %v309
    %v311 = vand.u32 %v310, 4294901760
    %v312 = vsub.f32 %v310, %v311
    %v313 = vand.u32 %v312, 4294901760
    %314 = vmatmul.mubr.f32.gmra.mxu0 %v313
    %v315 = vpop.f32.mrf.mxu0
    %v316 = vadd.f32 0.0, %v315
    %v317 = vpop.f32.mrf.mxu0
    %318 = vdwg.mxu0
    %319 = vmatprep.subr.mxu0 0.0
    %v320 = vand.u32 %v129, 4294901760
    %v321 = vsub.f32 %v129, %v320
    %v322 = vand.u32 %v321, 4294901760
    %v323 = vsub.f32 %v321, %v322
    %v324 = vand.u32 %v323, 4294901760
    %325 = vmatpush1.msra.mxu0 %v324
    %326 = vmatprep.subr.mxu0 0.0
    %v327 = vand.u32 %v128, 4294901760
    %v328 = vsub.f32 %v128, %v327
    %v329 = vand.u32 %v328, 4294901760
    %v330 = vsub.f32 %v328, %v329
    %v331 = vand.u32 %v330, 4294901760
    %332 = vmatpush1.msra.mxu0 %v331
    %333 = vmatprep.subr.mxu0 0.0
    %v334 = vand.u32 %v127, 4294901760
    %v335 = vsub.f32 %v127, %v334
    %v336 = vand.u32 %v335, 4294901760
    %v337 = vsub.f32 %v335, %v336
    %v338 = vand.u32 %v337, 4294901760
    %339 = vmatpush1.msra.mxu0 %v338
    %340 = vmatprep.subr.mxu0 0.0
    %v341 = vand.u32 %v126, 4294901760
    %v342 = vsub.f32 %v126, %v341
    %v343 = vand.u32 %v342, 4294901760
    %v344 = vsub.f32 %v342, %v343
    %v345 = vand.u32 %v344, 4294901760
    %346 = vmatpush1.msra.mxu0 %v345
    %347 = vmatprep.subr.mxu0 0.0
    %v348 = vand.u32 %v125, 4294901760
    %v349 = vsub.f32 %v125, %v348
    %v350 = vand.u32 %v349, 4294901760
    %v351 = vsub.f32 %v349, %v350
    %v352 = vand.u32 %v351, 4294901760
    %353 = vmatpush1.msra.mxu0 %v352
    %354 = vmatprep.subr.mxu0 0.0
    %v355 = vand.u32 %v124, 4294901760
    %v356 = vsub.f32 %v124, %v355
    %v357 = vand.u32 %v356, 4294901760
    %v358 = vsub.f32 %v356, %v357
    %v359 = vand.u32 %v358, 4294901760
    %360 = vmatpush1.msra.mxu0 %v359
    %361 = vmatprep.subr.mxu0 0.0
    %v362 = vand.u32 %v123, 4294901760
    %v363 = vsub.f32 %v123, %v362
    %v364 = vand.u32 %v363, 4294901760
    %v365 = vsub.f32 %v363, %v364
    %v366 = vand.u32 %v365, 4294901760
    %367 = vmatpush1.msra.mxu0 %v366
    %368 = vmatprep.subr.mxu0 0.0
    %v369 = vand.u32 %v122, 4294901760
    %v370 = vsub.f32 %v122, %v369
    %v371 = vand.u32 %v370, 4294901760
    %v372 = vsub.f32 %v370, %v371
    %v373 = vand.u32 %v372, 4294901760
    %374 = vmatpush1.msra.mxu0 %v373
    %375 = vmatprep.subr.mxu0 0.0
    %v376 = vand.u32 %v121, 4294901760
    %v377 = vsub.f32 %v121, %v376
    %v378 = vand.u32 %v377, 4294901760
    %v379 = vsub.f32 %v377, %v378
    %v380 = vand.u32 %v379, 4294901760
    %381 = vmatpush1.msra.mxu0 %v380
    %382 = vmatprep.subr.mxu0 0.0
    %v383 = vand.u32 %v120, 4294901760
    %v384 = vsub.f32 %v120, %v383
    %v385 = vand.u32 %v384, 4294901760
    %v386 = vsub.f32 %v384, %v385
    %v387 = vand.u32 %v386, 4294901760
    %388 = vmatpush1.msra.mxu0 %v387
    %389 = vmatprep.subr.mxu0 0.0
    %v390 = vand.u32 %v119, 4294901760
    %v391 = vsub.f32 %v119, %v390
    %v392 = vand.u32 %v391, 4294901760
    %v393 = vsub.f32 %v391, %v392
    %v394 = vand.u32 %v393, 4294901760
    %395 = vmatpush1.msra.mxu0 %v394
    %396 = vmatprep.subr.mxu0 0.0
    %v397 = vand.u32 %v118, 4294901760
    %v398 = vsub.f32 %v118, %v397
    %v399 = vand.u32 %v398, 4294901760
    %v400 = vsub.f32 %v398, %v399
    %v401 = vand.u32 %v400, 4294901760
    %402 = vmatpush1.msra.mxu0 %v401
    %403 = vmatprep.subr.mxu0 0.0
    %v404 = vand.u32 %v117, 4294901760
    %v405 = vsub.f32 %v117, %v404
    %v406 = vand.u32 %v405, 4294901760
    %v407 = vsub.f32 %v405, %v406
    %v408 = vand.u32 %v407, 4294901760
    %409 = vmatpush1.msra.mxu0 %v408
    %410 = vmatprep.subr.mxu0 0.0
    %v411 = vand.u32 %v116, 4294901760
    %v412 = vsub.f32 %v116, %v411
    %v413 = vand.u32 %v412, 4294901760
    %v414 = vsub.f32 %v412, %v413
    %v415 = vand.u32 %v414, 4294901760
    %416 = vmatpush1.msra.mxu0 %v415
    %417 = vmatprep.subr.mxu0 0.0
    %v418 = vand.u32 %v115, 4294901760
    %v419 = vsub.f32 %v115, %v418
    %v420 = vand.u32 %v419, 4294901760
    %v421 = vsub.f32 %v419, %v420
    %v422 = vand.u32 %v421, 4294901760
    %423 = vmatpush1.msra.mxu0 %v422
    %424 = vmatprep.subr.mxu0 0.0
    %v425 = vand.u32 %v114, 4294901760
    %v426 = vsub.f32 %v114, %v425
    %v427 = vand.u32 %v426, 4294901760
    %v428 = vsub.f32 %v426, %v427
    %v429 = vand.u32 %v428, 4294901760
    %430 = vmatpush1.msra.mxu0 %v429
    %431 = vmatprep.subr.mxu0 0.0
    %432 = vmatpush2.msra.mxu0 0.0
    %433 = vmatprep.subr.mxu0 0.0
    %434 = vmatpush2.msra.mxu0 0.0
    %435 = vmatprep.subr.mxu0 0.0
    %436 = vmatpush2.msra.mxu0 0.0
    %437 = vmatprep.subr.mxu0 0.0
    %438 = vmatpush2.msra.mxu0 0.0
    %439 = vmatprep.subr.mxu0 0.0
    %440 = vmatpush2.msra.mxu0 0.0
    %441 = vmatprep.subr.mxu0 0.0
    %442 = vmatpush2.msra.mxu0 0.0
    %443 = vmatprep.subr.mxu0 0.0
    %444 = vmatpush2.msra.mxu0 0.0
    %445 = vmatprep.subr.mxu0 0.0
    %446 = vmatpush2.msra.mxu0 0.0
    %447 = vmatprep.subr.mxu0 0.0
    %448 = vmatpush2.msra.mxu0 0.0
    %449 = vmatprep.subr.mxu0 0.0
    %450 = vmatpush2.msra.mxu0 0.0
    %451 = vmatprep.subr.mxu0 0.0
    %452 = vmatpush2.msra.mxu0 0.0
    %453 = vmatprep.subr.mxu0 0.0
    %454 = vmatpush2.msra.mxu0 0.0
    %455 = vmatprep.subr.mxu0 0.0
    %456 = vmatpush2.msra.mxu0 0.0
    %457 = vmatprep.subr.mxu0 0.0
    %458 = vmatpush2.msra.mxu0 0.0
    %459 = vmatprep.subr.mxu0 0.0
    %460 = vmatpush2.msra.mxu0 0.0
    %461 = vmatprep.subr.mxu0 0.0
    %462 = vmatpush2.msra.mxu0 0.0
    %463 = vmatprep.mubr.f32.mxu0 0.0
    %v464 = vand.u32 %v183, 4294901760
    %465 = vmatmul.mubr.f32.gmra.mxu0 %v464
    %v466 = vpop.f32.mrf.mxu0
    %v467 = vadd.f32 %v276, %v466
    %v468 = vpop.f32.mrf.mxu0
    %469 = vmatprep.mubr.f32.mxu0 0.0
    %v470 = vand.u32 %v184, 4294901760
    %471 = vmatmul.mubr.f32.gmra.mxu0 %v470
    %v472 = vpop.f32.mrf.mxu0
    %v473 = vadd.f32 %v286, %v472
    %v474 = vpop.f32.mrf.mxu0
    %475 = vmatprep.mubr.f32.mxu0 0.0
    %v476 = vand.u32 %v185, 4294901760
    %477 = vmatmul.mubr.f32.gmra.mxu0 %v476
    %v478 = vpop.f32.mrf.mxu0
    %v479 = vadd.f32 %v296, %v478
    %v480 = vpop.f32.mrf.mxu0
    %481 = vmatprep.mubr.f32.mxu0 0.0
    %v482 = vand.u32 %v186, 4294901760
    %483 = vmatmul.mubr.f32.gmra.mxu0 %v482
    %v484 = vpop.f32.mrf.mxu0
    %v485 = vadd.f32 %v306, %v484
    %v486 = vpop.f32.mrf.mxu0
    %487 = vmatprep.mubr.f32.mxu0 0.0
    %v488 = vand.u32 %v187, 4294901760
    %489 = vmatmul.mubr.f32.gmra.mxu0 %v488
    %v490 = vpop.f32.mrf.mxu0
    %v491 = vadd.f32 %v316, %v490
    %v492 = vpop.f32.mrf.mxu0
    %493 = vdwg.mxu0
    %494 = vmatprep.subr.mxu0 0.0
    %v495 = vand.u32 %v129, 4294901760
    %v496 = vsub.f32 %v129, %v495
    %497 = vmatpush1.msra.mxu0 %v496
    %498 = vmatprep.subr.mxu0 0.0
    %v499 = vand.u32 %v128, 4294901760
    %v500 = vsub.f32 %v128, %v499
    %501 = vmatpush1.msra.mxu0 %v500
    %502 = vmatprep.subr.mxu0 0.0
    %v503 = vand.u32 %v127, 4294901760
    %v504 = vsub.f32 %v127, %v503
    %505 = vmatpush1.msra.mxu0 %v504
    %506 = vmatprep.subr.mxu0 0.0
    %v507 = vand.u32 %v126, 4294901760
    %v508 = vsub.f32 %v126, %v507
    %509 = vmatpush1.msra.mxu0 %v508
    %510 = vmatprep.subr.mxu0 0.0
    %v511 = vand.u32 %v125, 4294901760
    %v512 = vsub.f32 %v125, %v511
    %513 = vmatpush1.msra.mxu0 %v512
    %514 = vmatprep.subr.mxu0 0.0
    %v515 = vand.u32 %v124, 4294901760
    %v516 = vsub.f32 %v124, %v515
    %517 = vmatpush1.msra.mxu0 %v516
    %518 = vmatprep.subr.mxu0 0.0
    %v519 = vand.u32 %v123, 4294901760
    %v520 = vsub.f32 %v123, %v519
    %521 = vmatpush1.msra.mxu0 %v520
    %522 = vmatprep.subr.mxu0 0.0
    %v523 = vand.u32 %v122, 4294901760
    %v524 = vsub.f32 %v122, %v523
    %525 = vmatpush1.msra.mxu0 %v524
    %526 = vmatprep.subr.mxu0 0.0
    %v527 = vand.u32 %v121, 4294901760
    %v528 = vsub.f32 %v121, %v527
    %529 = vmatpush1.msra.mxu0 %v528
    %530 = vmatprep.subr.mxu0 0.0
    %v531 = vand.u32 %v120, 4294901760
    %v532 = vsub.f32 %v120, %v531
    %533 = vmatpush1.msra.mxu0 %v532
    %534 = vmatprep.subr.mxu0 0.0
    %v535 = vand.u32 %v119, 4294901760
    %v536 = vsub.f32 %v119, %v535
    %537 = vmatpush1.msra.mxu0 %v536
    %538 = vmatprep.subr.mxu0 0.0
    %v539 = vand.u32 %v118, 4294901760
    %v540 = vsub.f32 %v118, %v539
    %541 = vmatpush1.msra.mxu0 %v540
    %542 = vmatprep.subr.mxu0 0.0
    %v543 = vand.u32 %v117, 4294901760
    %v544 = vsub.f32 %v117, %v543
    %545 = vmatpush1.msra.mxu0 %v544
    %546 = vmatprep.subr.mxu0 0.0
    %v547 = vand.u32 %v116, 4294901760
    %v548 = vsub.f32 %v116, %v547
    %549 = vmatpush1.msra.mxu0 %v548
    %550 = vmatprep.subr.mxu0 0.0
    %v551 = vand.u32 %v115, 4294901760
    %v552 = vsub.f32 %v115, %v551
    %553 = vmatpush1.msra.mxu0 %v552
    %554 = vmatprep.subr.mxu0 0.0
    %v555 = vand.u32 %v114, 4294901760
    %v556 = vsub.f32 %v114, %v555
    %557 = vmatpush1.msra.mxu0 %v556
    %558 = vmatprep.subr.mxu0 0.0
    %559 = vmatpush2.msra.mxu0 0.0
    %560 = vmatprep.subr.mxu0 0.0
    %561 = vmatpush2.msra.mxu0 0.0
    %562 = vmatprep.subr.mxu0 0.0
    %563 = vmatpush2.msra.mxu0 0.0
    %564 = vmatprep.subr.mxu0 0.0
    %565 = vmatpush2.msra.mxu0 0.0
    %566 = vmatprep.subr.mxu0 0.0
    %567 = vmatpush2.msra.mxu0 0.0
    %568 = vmatprep.subr.mxu0 0.0
    %569 = vmatpush2.msra.mxu0 0.0
    %570 = vmatprep.subr.mxu0 0.0
    %571 = vmatpush2.msra.mxu0 0.0
    %572 = vmatprep.subr.mxu0 0.0
    %573 = vmatpush2.msra.mxu0 0.0
    %574 = vmatprep.subr.mxu0 0.0
    %575 = vmatpush2.msra.mxu0 0.0
    %576 = vmatprep.subr.mxu0 0.0
    %577 = vmatpush2.msra.mxu0 0.0
    %578 = vmatprep.subr.mxu0 0.0
    %579 = vmatpush2.msra.mxu0 0.0
    %580 = vmatprep.subr.mxu0 0.0
    %581 = vmatpush2.msra.mxu0 0.0
    %582 = vmatprep.subr.mxu0 0.0
    %583 = vmatpush2.msra.mxu0 0.0
    %584 = vmatprep.subr.mxu0 0.0
    %585 = vmatpush2.msra.mxu0 0.0
    %586 = vmatprep.subr.mxu0 0.0
    %587 = vmatpush2.msra.mxu0 0.0
    %588 = vmatprep.subr.mxu0 0.0
    %589 = vmatpush2.msra.mxu0 0.0
    %590 = vmatprep.mubr.f32.mxu0 0.0
    %v591 = vand.u32 %v183, 4294901760
    %v592 = vsub.f32 %v183, %v591
    %593 = vmatmul.mubr.f32.gmra.mxu0 %v592
    %v594 = vpop.f32.mrf.mxu0
    %v595 = vadd.f32 %v467, %v594
    %v596 = vpop.f32.mrf.mxu0
    %597 = vmatprep.mubr.f32.mxu0 0.0
    %v598 = vand.u32 %v184, 4294901760
    %v599 = vsub.f32 %v184, %v598
    %600 = vmatmul.mubr.f32.gmra.mxu0 %v599
    %v601 = vpop.f32.mrf.mxu0
    %v602 = vadd.f32 %v473, %v601
    %v603 = vpop.f32.mrf.mxu0
    %604 = vmatprep.mubr.f32.mxu0 0.0
    %v605 = vand.u32 %v185, 4294901760
    %v606 = vsub.f32 %v185, %v605
    %607 = vmatmul.mubr.f32.gmra.mxu0 %v606
    %v608 = vpop.f32.mrf.mxu0
    %v609 = vadd.f32 %v479, %v608
    %v610 = vpop.f32.mrf.mxu0
    %611 = vmatprep.mubr.f32.mxu0 0.0
    %v612 = vand.u32 %v186, 4294901760
    %v613 = vsub.f32 %v186, %v612
    %614 = vmatmul.mubr.f32.gmra.mxu0 %v613
    %v615 = vpop.f32.mrf.mxu0
    %v616 = vadd.f32 %v485, %v615
    %v617 = vpop.f32.mrf.mxu0
    %618 = vmatprep.mubr.f32.mxu0 0.0
    %v619 = vand.u32 %v187, 4294901760
    %v620 = vsub.f32 %v187, %v619
    %621 = vmatmul.mubr.f32.gmra.mxu0 %v620
    %v622 = vpop.f32.mrf.mxu0
    %v623 = vadd.f32 %v491, %v622
    %v624 = vpop.f32.mrf.mxu0
    %625 = vdwg.mxu0
    %626 = vmatprep.subr.mxu0 0.0
    %v627 = vand.u32 %v129, 4294901760
    %628 = vmatpush1.msra.mxu0 %v627
    %629 = vmatprep.subr.mxu0 0.0
    %v630 = vand.u32 %v128, 4294901760
    %631 = vmatpush1.msra.mxu0 %v630
    %632 = vmatprep.subr.mxu0 0.0
    %v633 = vand.u32 %v127, 4294901760
    %634 = vmatpush1.msra.mxu0 %v633
    %635 = vmatprep.subr.mxu0 0.0
    %v636 = vand.u32 %v126, 4294901760
    %637 = vmatpush1.msra.mxu0 %v636
    %638 = vmatprep.subr.mxu0 0.0
    %v639 = vand.u32 %v125, 4294901760
    %640 = vmatpush1.msra.mxu0 %v639
    %641 = vmatprep.subr.mxu0 0.0
    %v642 = vand.u32 %v124, 4294901760
    %643 = vmatpush1.msra.mxu0 %v642
    %644 = vmatprep.subr.mxu0 0.0
    %v645 = vand.u32 %v123, 4294901760
    %646 = vmatpush1.msra.mxu0 %v645
    %647 = vmatprep.subr.mxu0 0.0
    %v648 = vand.u32 %v122, 4294901760
    %649 = vmatpush1.msra.mxu0 %v648
    %650 = vmatprep.subr.mxu0 0.0
    %v651 = vand.u32 %v121, 4294901760
    %652 = vmatpush1.msra.mxu0 %v651
    %653 = vmatprep.subr.mxu0 0.0
    %v654 = vand.u32 %v120, 4294901760
    %655 = vmatpush1.msra.mxu0 %v654
    %656 = vmatprep.subr.mxu0 0.0
    %v657 = vand.u32 %v119, 4294901760
    %658 = vmatpush1.msra.mxu0 %v657
    %659 = vmatprep.subr.mxu0 0.0
    %v660 = vand.u32 %v118, 4294901760
    %661 = vmatpush1.msra.mxu0 %v660
    %662 = vmatprep.subr.mxu0 0.0
    %v663 = vand.u32 %v117, 4294901760
    %664 = vmatpush1.msra.mxu0 %v663
    %665 = vmatprep.subr.mxu0 0.0
    %v666 = vand.u32 %v116, 4294901760
    %667 = vmatpush1.msra.mxu0 %v666
    %668 = vmatprep.subr.mxu0 0.0
    %v669 = vand.u32 %v115, 4294901760
    %670 = vmatpush1.msra.mxu0 %v669
    %671 = vmatprep.subr.mxu0 0.0
    %v672 = vand.u32 %v114, 4294901760
    %673 = vmatpush1.msra.mxu0 %v672
    %674 = vmatprep.subr.mxu0 0.0
    %675 = vmatpush2.msra.mxu0 0.0
    %676 = vmatprep.subr.mxu0 0.0
    %677 = vmatpush2.msra.mxu0 0.0
    %678 = vmatprep.subr.mxu0 0.0
    %679 = vmatpush2.msra.mxu0 0.0
    %680 = vmatprep.subr.mxu0 0.0
    %681 = vmatpush2.msra.mxu0 0.0
    %682 = vmatprep.subr.mxu0 0.0
    %683 = vmatpush2.msra.mxu0 0.0
    %684 = vmatprep.subr.mxu0 0.0
    %685 = vmatpush2.msra.mxu0 0.0
    %686 = vmatprep.subr.mxu0 0.0
    %687 = vmatpush2.msra.mxu0 0.0
    %688 = vmatprep.subr.mxu0 0.0
    %689 = vmatpush2.msra.mxu0 0.0
    %690 = vmatprep.subr.mxu0 0.0
    %691 = vmatpush2.msra.mxu0 0.0
    %692 = vmatprep.subr.mxu0 0.0
    %693 = vmatpush2.msra.mxu0 0.0
    %694 = vmatprep.subr.mxu0 0.0
    %695 = vmatpush2.msra.mxu0 0.0
    %696 = vmatprep.subr.mxu0 0.0
    %697 = vmatpush2.msra.mxu0 0.0
    %698 = vmatprep.subr.mxu0 0.0
    %699 = vmatpush2.msra.mxu0 0.0
    %700 = vmatprep.subr.mxu0 0.0
    %701 = vmatpush2.msra.mxu0 0.0
    %702 = vmatprep.subr.mxu0 0.0
    %703 = vmatpush2.msra.mxu0 0.0
    %704 = vmatprep.subr.mxu0 0.0
    %705 = vmatpush2.msra.mxu0 0.0
    %706 = vmatprep.mubr.f32.mxu0 0.0
    %v707 = vand.u32 %v183, 4294901760
    %v708 = vsub.f32 %v183, %v707
    %v709 = vand.u32 %v708, 4294901760
    %710 = vmatmul.mubr.f32.gmra.mxu0 %v709
    %v711 = vpop.f32.mrf.mxu0
    %v712 = vadd.f32 %v595, %v711
    %v713 = vpop.f32.mrf.mxu0
    %714 = vmatprep.mubr.f32.mxu0 0.0
    %v715 = vand.u32 %v184, 4294901760
    %v716 = vsub.f32 %v184, %v715
    %v717 = vand.u32 %v716, 4294901760
    %718 = vmatmul.mubr.f32.gmra.mxu0 %v717
    %v719 = vpop.f32.mrf.mxu0
    %v720 = vadd.f32 %v602, %v719
    %v721 = vpop.f32.mrf.mxu0
    %722 = vmatprep.mubr.f32.mxu0 0.0
    %v723 = vand.u32 %v185, 4294901760
    %v724 = vsub.f32 %v185, %v723
    %v725 = vand.u32 %v724, 4294901760
    %726 = vmatmul.mubr.f32.gmra.mxu0 %v725
    %v727 = vpop.f32.mrf.mxu0
    %v728 = vadd.f32 %v609, %v727
    %v729 = vpop.f32.mrf.mxu0
    %730 = vmatprep.mubr.f32.mxu0 0.0
    %v731 = vand.u32 %v186, 4294901760
    %v732 = vsub.f32 %v186, %v731
    %v733 = vand.u32 %v732, 4294901760
    %734 = vmatmul.mubr.f32.gmra.mxu0 %v733
    %v735 = vpop.f32.mrf.mxu0
    %v736 = vadd.f32 %v616, %v735
    %v737 = vpop.f32.mrf.mxu0
    %738 = vmatprep.mubr.f32.mxu0 0.0
    %v739 = vand.u32 %v187, 4294901760
    %v740 = vsub.f32 %v187, %v739
    %v741 = vand.u32 %v740, 4294901760
    %742 = vmatmul.mubr.f32.gmra.mxu0 %v741
    %v743 = vpop.f32.mrf.mxu0
    %v744 = vadd.f32 %v623, %v743
    %v745 = vpop.f32.mrf.mxu0
    %746 = vdwg.mxu0
    %747 = vmatprep.subr.mxu0 0.0
    %v748 = vand.u32 %v129, 4294901760
    %v749 = vsub.f32 %v129, %v748
    %v750 = vand.u32 %v749, 4294901760
    %751 = vmatpush1.msra.mxu0 %v750
    %752 = vmatprep.subr.mxu0 0.0
    %v753 = vand.u32 %v128, 4294901760
    %v754 = vsub.f32 %v128, %v753
    %v755 = vand.u32 %v754, 4294901760
    %756 = vmatpush1.msra.mxu0 %v755
    %757 = vmatprep.subr.mxu0 0.0
    %v758 = vand.u32 %v127, 4294901760
    %v759 = vsub.f32 %v127, %v758
    %v760 = vand.u32 %v759, 4294901760
    %761 = vmatpush1.msra.mxu0 %v760
    %762 = vmatprep.subr.mxu0 0.0
    %v763 = vand.u32 %v126, 4294901760
    %v764 = vsub.f32 %v126, %v763
    %v765 = vand.u32 %v764, 4294901760
    %766 = vmatpush1.msra.mxu0 %v765
    %767 = vmatprep.subr.mxu0 0.0
    %v768 = vand.u32 %v125, 4294901760
    %v769 = vsub.f32 %v125, %v768
    %v770 = vand.u32 %v769, 4294901760
    %771 = vmatpush1.msra.mxu0 %v770
    %772 = vmatprep.subr.mxu0 0.0
    %v773 = vand.u32 %v124, 4294901760
    %v774 = vsub.f32 %v124, %v773
    %v775 = vand.u32 %v774, 4294901760
    %776 = vmatpush1.msra.mxu0 %v775
    %777 = vmatprep.subr.mxu0 0.0
    %v778 = vand.u32 %v123, 4294901760
    %v779 = vsub.f32 %v123, %v778
    %v780 = vand.u32 %v779, 4294901760
    %781 = vmatpush1.msra.mxu0 %v780
    %782 = vmatprep.subr.mxu0 0.0
    %v783 = vand.u32 %v122, 4294901760
    %v784 = vsub.f32 %v122, %v783
    %v785 = vand.u32 %v784, 4294901760
    %786 = vmatpush1.msra.mxu0 %v785
    %787 = vmatprep.subr.mxu0 0.0
    %v788 = vand.u32 %v121, 4294901760
    %v789 = vsub.f32 %v121, %v788
    %v790 = vand.u32 %v789, 4294901760
    %791 = vmatpush1.msra.mxu0 %v790
    %792 = vmatprep.subr.mxu0 0.0
    %v793 = vand.u32 %v120, 4294901760
    %v794 = vsub.f32 %v120, %v793
    %v795 = vand.u32 %v794, 4294901760
    %796 = vmatpush1.msra.mxu0 %v795
    %797 = vmatprep.subr.mxu0 0.0
    %v798 = vand.u32 %v119, 4294901760
    %v799 = vsub.f32 %v119, %v798
    %v800 = vand.u32 %v799, 4294901760
    %801 = vmatpush1.msra.mxu0 %v800
    %802 = vmatprep.subr.mxu0 0.0
    %v803 = vand.u32 %v118, 4294901760
    %v804 = vsub.f32 %v118, %v803
    %v805 = vand.u32 %v804, 4294901760
    %806 = vmatpush1.msra.mxu0 %v805
    %807 = vmatprep.subr.mxu0 0.0
    %v808 = vand.u32 %v117, 4294901760
    %v809 = vsub.f32 %v117, %v808
    %v810 = vand.u32 %v809, 4294901760
    %811 = vmatpush1.msra.mxu0 %v810
    %812 = vmatprep.subr.mxu0 0.0
    %v813 = vand.u32 %v116, 4294901760
    %v814 = vsub.f32 %v116, %v813
    %v815 = vand.u32 %v814, 4294901760
    %816 = vmatpush1.msra.mxu0 %v815
    %817 = vmatprep.subr.mxu0 0.0
    %v818 = vand.u32 %v115, 4294901760
    %v819 = vsub.f32 %v115, %v818
    %v820 = vand.u32 %v819, 4294901760
    %821 = vmatpush1.msra.mxu0 %v820
    %822 = vmatprep.subr.mxu0 0.0
    %v823 = vand.u32 %v114, 4294901760
    %v824 = vsub.f32 %v114, %v823
    %v825 = vand.u32 %v824, 4294901760
    %826 = vmatpush1.msra.mxu0 %v825
    %827 = vmatprep.subr.mxu0 0.0
    %828 = vmatpush2.msra.mxu0 0.0
    %829 = vmatprep.subr.mxu0 0.0
    %830 = vmatpush2.msra.mxu0 0.0
    %831 = vmatprep.subr.mxu0 0.0
    %832 = vmatpush2.msra.mxu0 0.0
    %833 = vmatprep.subr.mxu0 0.0
    %834 = vmatpush2.msra.mxu0 0.0
    %835 = vmatprep.subr.mxu0 0.0
    %836 = vmatpush2.msra.mxu0 0.0
    %837 = vmatprep.subr.mxu0 0.0
    %838 = vmatpush2.msra.mxu0 0.0
    %839 = vmatprep.subr.mxu0 0.0
    %840 = vmatpush2.msra.mxu0 0.0
    %841 = vmatprep.subr.mxu0 0.0
    %842 = vmatpush2.msra.mxu0 0.0
    %843 = vmatprep.subr.mxu0 0.0
    %844 = vmatpush2.msra.mxu0 0.0
    %845 = vmatprep.subr.mxu0 0.0
    %846 = vmatpush2.msra.mxu0 0.0
    %847 = vmatprep.subr.mxu0 0.0
    %848 = vmatpush2.msra.mxu0 0.0
    %849 = vmatprep.subr.mxu0 0.0
    %850 = vmatpush2.msra.mxu0 0.0
    %851 = vmatprep.subr.mxu0 0.0
    %852 = vmatpush2.msra.mxu0 0.0
    %853 = vmatprep.subr.mxu0 0.0
    %854 = vmatpush2.msra.mxu0 0.0
    %855 = vmatprep.subr.mxu0 0.0
    %856 = vmatpush2.msra.mxu0 0.0
    %857 = vmatprep.subr.mxu0 0.0
    %858 = vmatpush2.msra.mxu0 0.0
    %859 = vmatprep.mubr.f32.mxu0 0.0
    %v860 = vand.u32 %v183, 4294901760
    %861 = vmatmul.mubr.f32.gmra.mxu0 %v860
    %v862 = vpop.f32.mrf.mxu0
    %v863 = vadd.f32 %v712, %v862
    %v864 = vpop.f32.mrf.mxu0
    %865 = vmatprep.mubr.f32.mxu0 0.0
    %v866 = vand.u32 %v184, 4294901760
    %867 = vmatmul.mubr.f32.gmra.mxu0 %v866
    %v868 = vpop.f32.mrf.mxu0
    %v869 = vadd.f32 %v720, %v868
    %v870 = vpop.f32.mrf.mxu0
    %871 = vmatprep.mubr.f32.mxu0 0.0
    %v872 = vand.u32 %v185, 4294901760
    %873 = vmatmul.mubr.f32.gmra.mxu0 %v872
    %v874 = vpop.f32.mrf.mxu0
    %v875 = vadd.f32 %v728, %v874
    %v876 = vpop.f32.mrf.mxu0
    %877 = vmatprep.mubr.f32.mxu0 0.0
    %v878 = vand.u32 %v186, 4294901760
    %879 = vmatmul.mubr.f32.gmra.mxu0 %v878
    %v880 = vpop.f32.mrf.mxu0
    %v881 = vadd.f32 %v736, %v880
    %v882 = vpop.f32.mrf.mxu0
    %883 = vmatprep.mubr.f32.mxu0 0.0
    %v884 = vand.u32 %v187, 4294901760
    %885 = vmatmul.mubr.f32.gmra.mxu0 %v884
    %v886 = vpop.f32.mrf.mxu0
    %v887 = vadd.f32 %v744, %v886
    %v888 = vpop.f32.mrf.mxu0
    %889 = vdwg.mxu0
    %890 = vmatprep.subr.mxu0 0.0
    %v891 = vand.u32 %v129, 4294901760
    %892 = vmatpush1.msra.mxu0 %v891
    %893 = vmatprep.subr.mxu0 0.0
    %v894 = vand.u32 %v128, 4294901760
    %895 = vmatpush1.msra.mxu0 %v894
    %896 = vmatprep.subr.mxu0 0.0
    %v897 = vand.u32 %v127, 4294901760
    %898 = vmatpush1.msra.mxu0 %v897
    %899 = vmatprep.subr.mxu0 0.0
    %v900 = vand.u32 %v126, 4294901760
    %901 = vmatpush1.msra.mxu0 %v900
    %902 = vmatprep.subr.mxu0 0.0
    %v903 = vand.u32 %v125, 4294901760
    %904 = vmatpush1.msra.mxu0 %v903
    %905 = vmatprep.subr.mxu0 0.0
    %v906 = vand.u32 %v124, 4294901760
    %907 = vmatpush1.msra.mxu0 %v906
    %908 = vmatprep.subr.mxu0 0.0
    %v909 = vand.u32 %v123, 4294901760
    %910 = vmatpush1.msra.mxu0 %v909
    %911 = vmatprep.subr.mxu0 0.0
    %v912 = vand.u32 %v122, 4294901760
    %913 = vmatpush1.msra.mxu0 %v912
    %914 = vmatprep.subr.mxu0 0.0
    %v915 = vand.u32 %v121, 4294901760
    %916 = vmatpush1.msra.mxu0 %v915
    %917 = vmatprep.subr.mxu0 0.0
    %v918 = vand.u32 %v120, 4294901760
    %919 = vmatpush1.msra.mxu0 %v918
    %920 = vmatprep.subr.mxu0 0.0
    %v921 = vand.u32 %v119, 4294901760
    %922 = vmatpush1.msra.mxu0 %v921
    %923 = vmatprep.subr.mxu0 0.0
    %v924 = vand.u32 %v118, 4294901760
    %925 = vmatpush1.msra.mxu0 %v924
    %926 = vmatprep.subr.mxu0 0.0
    %v927 = vand.u32 %v117, 4294901760
    %928 = vmatpush1.msra.mxu0 %v927
    %929 = vmatprep.subr.mxu0 0.0
    %v930 = vand.u32 %v116, 4294901760
    %931 = vmatpush1.msra.mxu0 %v930
    %932 = vmatprep.subr.mxu0 0.0
    %v933 = vand.u32 %v115, 4294901760
    %934 = vmatpush1.msra.mxu0 %v933
    %935 = vmatprep.subr.mxu0 0.0
    %v936 = vand.u32 %v114, 4294901760
    %937 = vmatpush1.msra.mxu0 %v936
    %938 = vmatprep.subr.mxu0 0.0
    %939 = vmatpush2.msra.mxu0 0.0
    %940 = vmatprep.subr.mxu0 0.0
    %941 = vmatpush2.msra.mxu0 0.0
    %942 = vmatprep.subr.mxu0 0.0
    %943 = vmatpush2.msra.mxu0 0.0
    %944 = vmatprep.subr.mxu0 0.0
    %945 = vmatpush2.msra.mxu0 0.0
    %946 = vmatprep.subr.mxu0 0.0
    %947 = vmatpush2.msra.mxu0 0.0
    %948 = vmatprep.subr.mxu0 0.0
    %949 = vmatpush2.msra.mxu0 0.0
    %950 = vmatprep.subr.mxu0 0.0
    %951 = vmatpush2.msra.mxu0 0.0
    %952 = vmatprep.subr.mxu0 0.0
    %953 = vmatpush2.msra.mxu0 0.0
    %954 = vmatprep.subr.mxu0 0.0
    %955 = vmatpush2.msra.mxu0 0.0
    %956 = vmatprep.subr.mxu0 0.0
    %957 = vmatpush2.msra.mxu0 0.0
    %958 = vmatprep.subr.mxu0 0.0
    %959 = vmatpush2.msra.mxu0 0.0
    %960 = vmatprep.subr.mxu0 0.0
    %961 = vmatpush2.msra.mxu0 0.0
    %962 = vmatprep.subr.mxu0 0.0
    %963 = vmatpush2.msra.mxu0 0.0
    %964 = vmatprep.subr.mxu0 0.0
    %965 = vmatpush2.msra.mxu0 0.0
    %966 = vmatprep.subr.mxu0 0.0
    %967 = vmatpush2.msra.mxu0 0.0
    %968 = vmatprep.subr.mxu0 0.0
    %969 = vmatpush2.msra.mxu0 0.0
    %970 = vmatprep.mubr.f32.mxu0 0.0
    %v971 = vand.u32 %v183, 4294901760
    %972 = vmatmul.mubr.f32.gmra.mxu0 %v971
    %v973 = vpop.f32.mrf.mxu0
    %v974 = vadd.f32 %v863, %v973
    %v975 = vpop.f32.mrf.mxu0
    %976 = vmatprep.mubr.f32.mxu0 0.0
    %v977 = vand.u32 %v184, 4294901760
    %978 = vmatmul.mubr.f32.gmra.mxu0 %v977
    %v979 = vpop.f32.mrf.mxu0
    %v980 = vadd.f32 %v869, %v979
    %v981 = vpop.f32.mrf.mxu0
    %982 = vmatprep.mubr.f32.mxu0 0.0
    %v983 = vand.u32 %v185, 4294901760
    %984 = vmatmul.mubr.f32.gmra.mxu0 %v983
    %v985 = vpop.f32.mrf.mxu0
    %v986 = vadd.f32 %v875, %v985
    %v987 = vpop.f32.mrf.mxu0
    %988 = vmatprep.mubr.f32.mxu0 0.0
    %v989 = vand.u32 %v186, 4294901760
    %990 = vmatmul.mubr.f32.gmra.mxu0 %v989
    %v991 = vpop.f32.mrf.mxu0
    %v992 = vadd.f32 %v881, %v991
    %v993 = vpop.f32.mrf.mxu0
    %994 = vmatprep.mubr.f32.mxu0 0.0
    %v995 = vand.u32 %v187, 4294901760
    %996 = vmatmul.mubr.f32.gmra.mxu0 %v995
    %v997 = vpop.f32.mrf.mxu0
    %v998 = vadd.f32 %v887, %v997
    %v999 = vpop.f32.mrf.mxu0
    %1000 = vdwg.mxu0
    %v1001 = vld [vmem:[#allocation7] sm:$0xff]
    %v1002 = vld [vmem:[#allocation7 + $0x8] sm:$0xff]
    %v1003 = vld [vmem:[#allocation7 + $0x10] sm:$0xff]
    %v1004 = vld [vmem:[#allocation7 + $0x18] sm:$0xff]
    %v1005 = vld [vmem:[#allocation7 + $0x20] sm:$0x1]
    %1006 = vmatprep.subr.mxu0 0.0
    %v1007 = vand.u32 %v182, 4294901760
    %1008 = vmatpush1.msra.mxu0 %v1007
    %1009 = vmatprep.subr.mxu0 0.0
    %v1010 = vand.u32 %v181, 4294901760
    %1011 = vmatpush1.msra.mxu0 %v1010
    %1012 = vmatprep.subr.mxu0 0.0
    %v1013 = vand.u32 %v180, 4294901760
    %1014 = vmatpush1.msra.mxu0 %v1013
    %1015 = vmatprep.subr.mxu0 0.0
    %v1016 = vand.u32 %v179, 4294901760
    %1017 = vmatpush1.msra.mxu0 %v1016
    %1018 = vmatprep.subr.mxu0 0.0
    %v1019 = vand.u32 %v178, 4294901760
    %1020 = vmatpush1.msra.mxu0 %v1019
    %1021 = vmatprep.subr.mxu0 0.0
    %v1022 = vand.u32 %v177, 4294901760
    %1023 = vmatpush1.msra.mxu0 %v1022
    %1024 = vmatprep.subr.mxu0 0.0
    %v1025 = vand.u32 %v176, 4294901760
    %1026 = vmatpush1.msra.mxu0 %v1025
    %1027 = vmatprep.subr.mxu0 0.0
    %v1028 = vand.u32 %v175, 4294901760
    %1029 = vmatpush1.msra.mxu0 %v1028
    %1030 = vmatprep.subr.mxu0 0.0
    %v1031 = vand.u32 %v174, 4294901760
    %1032 = vmatpush1.msra.mxu0 %v1031
    %1033 = vmatprep.subr.mxu0 0.0
    %v1034 = vand.u32 %v173, 4294901760
    %1035 = vmatpush1.msra.mxu0 %v1034
    %1036 = vmatprep.subr.mxu0 0.0
    %v1037 = vand.u32 %v172, 4294901760
    %1038 = vmatpush1.msra.mxu0 %v1037
    %1039 = vmatprep.subr.mxu0 0.0
    %v1040 = vand.u32 %v171, 4294901760
    %1041 = vmatpush1.msra.mxu0 %v1040
    %1042 = vmatprep.subr.mxu0 0.0
    %v1043 = vand.u32 %v170, 4294901760
    %1044 = vmatpush1.msra.mxu0 %v1043
    %1045 = vmatprep.subr.mxu0 0.0
    %v1046 = vand.u32 %v169, 4294901760
    %1047 = vmatpush1.msra.mxu0 %v1046
    %1048 = vmatprep.subr.mxu0 0.0
    %v1049 = vand.u32 %v168, 4294901760
    %1050 = vmatpush1.msra.mxu0 %v1049
    %1051 = vmatprep.subr.mxu0 0.0
    %v1052 = vand.u32 %v167, 4294901760
    %1053 = vmatpush1.msra.mxu0 %v1052
    %1054 = vmatprep.subr.mxu0 0.0
    %1055 = vmatpush2.msra.mxu0 0.0
    %1056 = vmatprep.subr.mxu0 0.0
    %1057 = vmatpush2.msra.mxu0 0.0
    %1058 = vmatprep.subr.mxu0 0.0
    %1059 = vmatpush2.msra.mxu0 0.0
    %1060 = vmatprep.subr.mxu0 0.0
    %1061 = vmatpush2.msra.mxu0 0.0
    %1062 = vmatprep.subr.mxu0 0.0
    %1063 = vmatpush2.msra.mxu0 0.0
    %1064 = vmatprep.subr.mxu0 0.0
    %1065 = vmatpush2.msra.mxu0 0.0
    %1066 = vmatprep.subr.mxu0 0.0
    %1067 = vmatpush2.msra.mxu0 0.0
    %1068 = vmatprep.subr.mxu0 0.0
    %1069 = vmatpush2.msra.mxu0 0.0
    %1070 = vmatprep.subr.mxu0 0.0
    %1071 = vmatpush2.msra.mxu0 0.0
    %1072 = vmatprep.subr.mxu0 0.0
    %1073 = vmatpush2.msra.mxu0 0.0
    %1074 = vmatprep.subr.mxu0 0.0
    %1075 = vmatpush2.msra.mxu0 0.0
    %1076 = vmatprep.subr.mxu0 0.0
    %1077 = vmatpush2.msra.mxu0 0.0
    %1078 = vmatprep.subr.mxu0 0.0
    %1079 = vmatpush2.msra.mxu0 0.0
    %1080 = vmatprep.subr.mxu0 0.0
    %1081 = vmatpush2.msra.mxu0 0.0
    %1082 = vmatprep.subr.mxu0 0.0
    %1083 = vmatpush2.msra.mxu0 0.0
    %1084 = vmatprep.subr.mxu0 0.0
    %1085 = vmatpush2.msra.mxu0 0.0
    %1086 = vmatprep.mubr.f32.mxu0 0.0
    %v1087 = vand.u32 %v1001, 4294901760
    %v1088 = vsub.f32 %v1001, %v1087
    %v1089 = vand.u32 %v1088, 4294901760
    %v1090 = vsub.f32 %v1088, %v1089
    %v1091 = vand.u32 %v1090, 4294901760
    %1092 = vmatmul.mubr.f32.gmra.mxu0 %v1091
    %v1093 = vpop.f32.mrf.mxu0
    %v1094 = vadd.f32 0.0, %v1093
    %v1095 = vpop.f32.mrf.mxu0
    %1096 = vmatprep.mubr.f32.mxu0 0.0
    %v1097 = vand.u32 %v1002, 4294901760
    %v1098 = vsub.f32 %v1002, %v1097
    %v1099 = vand.u32 %v1098, 4294901760
    %v1100 = vsub.f32 %v1098, %v1099
    %v1101 = vand.u32 %v1100, 4294901760
    %1102 = vmatmul.mubr.f32.gmra.mxu0 %v1101
    %v1103 = vpop.f32.mrf.mxu0
    %v1104 = vadd.f32 0.0, %v1103
    %v1105 = vpop.f32.mrf.mxu0
    %1106 = vmatprep.mubr.f32.mxu0 0.0
    %v1107 = vand.u32 %v1003, 4294901760
    %v1108 = vsub.f32 %v1003, %v1107
    %v1109 = vand.u32 %v1108, 4294901760
    %v1110 = vsub.f32 %v1108, %v1109
    %v1111 = vand.u32 %v1110, 4294901760
    %1112 = vmatmul.mubr.f32.gmra.mxu0 %v1111
    %v1113 = vpop.f32.mrf.mxu0
    %v1114 = vadd.f32 0.0, %v1113
    %v1115 = vpop.f32.mrf.mxu0
    %1116 = vmatprep.mubr.f32.mxu0 0.0
    %v1117 = vand.u32 %v1004, 4294901760
    %v1118 = vsub.f32 %v1004, %v1117
    %v1119 = vand.u32 %v1118, 4294901760
    %v1120 = vsub.f32 %v1118, %v1119
    %v1121 = vand.u32 %v1120, 4294901760
    %1122 = vmatmul.mubr.f32.gmra.mxu0 %v1121
    %v1123 = vpop.f32.mrf.mxu0
    %v1124 = vadd.f32 0.0, %v1123
    %v1125 = vpop.f32.mrf.mxu0
    %1126 = vmatprep.mubr.f32.mxu0 0.0
    %v1127 = vand.u32 %v1005, 4294901760
    %v1128 = vsub.f32 %v1005, %v1127
    %v1129 = vand.u32 %v1128, 4294901760
    %v1130 = vsub.f32 %v1128, %v1129
    %v1131 = vand.u32 %v1130, 4294901760
    %1132 = vmatmul.mubr.f32.gmra.mxu0 %v1131
    %v1133 = vpop.f32.mrf.mxu0
    %v1134 = vadd.f32 0.0, %v1133
    %v1135 = vpop.f32.mrf.mxu0
    %1136 = vdwg.mxu0
    %1137 = vmatprep.subr.mxu0 0.0
    %v1138 = vand.u32 %v182, 4294901760
    %v1139 = vsub.f32 %v182, %v1138
    %v1140 = vand.u32 %v1139, 4294901760
    %v1141 = vsub.f32 %v1139, %v1140
    %v1142 = vand.u32 %v1141, 4294901760
    %1143 = vmatpush1.msra.mxu0 %v1142
    %1144 = vmatprep.subr.mxu0 0.0
    %v1145 = vand.u32 %v181, 4294901760
    %v1146 = vsub.f32 %v181, %v1145
    %v1147 = vand.u32 %v1146, 4294901760
    %v1148 = vsub.f32 %v1146, %v1147
    %v1149 = vand.u32 %v1148, 4294901760
    %1150 = vmatpush1.msra.mxu0 %v1149
    %1151 = vmatprep.subr.mxu0 0.0
    %v1152 = vand.u32 %v180, 4294901760
    %v1153 = vsub.f32 %v180, %v1152
    %v1154 = vand.u32 %v1153, 4294901760
    %v1155 = vsub.f32 %v1153, %v1154
    %v1156 = vand.u32 %v1155, 4294901760
    %1157 = vmatpush1.msra.mxu0 %v1156
    %1158 = vmatprep.subr.mxu0 0.0
    %v1159 = vand.u32 %v179, 4294901760
    %v1160 = vsub.f32 %v179, %v1159
    %v1161 = vand.u32 %v1160, 4294901760
    %v1162 = vsub.f32 %v1160, %v1161
    %v1163 = vand.u32 %v1162, 4294901760
    %1164 = vmatpush1.msra.mxu0 %v1163
    %1165 = vmatprep.subr.mxu0 0.0
    %v1166 = vand.u32 %v178, 4294901760
    %v1167 = vsub.f32 %v178, %v1166
    %v1168 = vand.u32 %v1167, 4294901760
    %v1169 = vsub.f32 %v1167, %v1168
    %v1170 = vand.u32 %v1169, 4294901760
    %1171 = vmatpush1.msra.mxu0 %v1170
    %1172 = vmatprep.subr.mxu0 0.0
    %v1173 = vand.u32 %v177, 4294901760
    %v1174 = vsub.f32 %v177, %v1173
    %v1175 = vand.u32 %v1174, 4294901760
    %v1176 = vsub.f32 %v1174, %v1175
    %v1177 = vand.u32 %v1176, 4294901760
    %1178 = vmatpush1.msra.mxu0 %v1177
    %1179 = vmatprep.subr.mxu0 0.0
    %v1180 = vand.u32 %v176, 4294901760
    %v1181 = vsub.f32 %v176, %v1180
    %v1182 = vand.u32 %v1181, 4294901760
    %v1183 = vsub.f32 %v1181, %v1182
    %v1184 = vand.u32 %v1183, 4294901760
    %1185 = vmatpush1.msra.mxu0 %v1184
    %1186 = vmatprep.subr.mxu0 0.0
    %v1187 = vand.u32 %v175, 4294901760
    %v1188 = vsub.f32 %v175, %v1187
    %v1189 = vand.u32 %v1188, 4294901760
    %v1190 = vsub.f32 %v1188, %v1189
    %v1191 = vand.u32 %v1190, 4294901760
    %1192 = vmatpush1.msra.mxu0 %v1191
    %1193 = vmatprep.subr.mxu0 0.0
    %v1194 = vand.u32 %v174, 4294901760
    %v1195 = vsub.f32 %v174, %v1194
    %v1196 = vand.u32 %v1195, 4294901760
    %v1197 = vsub.f32 %v1195, %v1196
    %v1198 = vand.u32 %v1197, 4294901760
    %1199 = vmatpush1.msra.mxu0 %v1198
    %1200 = vmatprep.subr.mxu0 0.0
    %v1201 = vand.u32 %v173, 4294901760
    %v1202 = vsub.f32 %v173, %v1201
    %v1203 = vand.u32 %v1202, 4294901760
    %v1204 = vsub.f32 %v1202, %v1203
    %v1205 = vand.u32 %v1204, 4294901760
    %1206 = vmatpush1.msra.mxu0 %v1205
    %1207 = vmatprep.subr.mxu0 0.0
    %v1208 = vand.u32 %v172, 4294901760
    %v1209 = vsub.f32 %v172, %v1208
    %v1210 = vand.u32 %v1209, 4294901760
    %v1211 = vsub.f32 %v1209, %v1210
    %v1212 = vand.u32 %v1211, 4294901760
    %1213 = vmatpush1.msra.mxu0 %v1212
    %1214 = vmatprep.subr.mxu0 0.0
    %v1215 = vand.u32 %v171, 4294901760
    %v1216 = vsub.f32 %v171, %v1215
    %v1217 = vand.u32 %v1216, 4294901760
    %v1218 = vsub.f32 %v1216, %v1217
    %v1219 = vand.u32 %v1218, 4294901760
    %1220 = vmatpush1.msra.mxu0 %v1219
    %1221 = vmatprep.subr.mxu0 0.0
    %v1222 = vand.u32 %v170, 4294901760
    %v1223 = vsub.f32 %v170, %v1222
    %v1224 = vand.u32 %v1223, 4294901760
    %v1225 = vsub.f32 %v1223, %v1224
    %v1226 = vand.u32 %v1225, 4294901760
    %1227 = vmatpush1.msra.mxu0 %v1226
    %1228 = vmatprep.subr.mxu0 0.0
    %v1229 = vand.u32 %v169, 4294901760
    %v1230 = vsub.f32 %v169, %v1229
    %v1231 = vand.u32 %v1230, 4294901760
    %v1232 = vsub.f32 %v1230, %v1231
    %v1233 = vand.u32 %v1232, 4294901760
    %1234 = vmatpush1.msra.mxu0 %v1233
    %1235 = vmatprep.subr.mxu0 0.0
    %v1236 = vand.u32 %v168, 4294901760
    %v1237 = vsub.f32 %v168, %v1236
    %v1238 = vand.u32 %v1237, 4294901760
    %v1239 = vsub.f32 %v1237, %v1238
    %v1240 = vand.u32 %v1239, 4294901760
    %1241 = vmatpush1.msra.mxu0 %v1240
    %1242 = vmatprep.subr.mxu0 0.0
    %v1243 = vand.u32 %v167, 4294901760
    %v1244 = vsub.f32 %v167, %v1243
    %v1245 = vand.u32 %v1244, 4294901760
    %v1246 = vsub.f32 %v1244, %v1245
    %v1247 = vand.u32 %v1246, 4294901760
    %1248 = vmatpush1.msra.mxu0 %v1247
    %1249 = vmatprep.subr.mxu0 0.0
    %1250 = vmatpush2.msra.mxu0 0.0
    %1251 = vmatprep.subr.mxu0 0.0
    %1252 = vmatpush2.msra.mxu0 0.0
    %1253 = vmatprep.subr.mxu0 0.0
    %1254 = vmatpush2.msra.mxu0 0.0
    %1255 = vmatprep.subr.mxu0 0.0
    %1256 = vmatpush2.msra.mxu0 0.0
    %1257 = vmatprep.subr.mxu0 0.0
    %1258 = vmatpush2.msra.mxu0 0.0
    %1259 = vmatprep.subr.mxu0 0.0
    %1260 = vmatpush2.msra.mxu0 0.0
    %1261 = vmatprep.subr.mxu0 0.0
    %1262 = vmatpush2.msra.mxu0 0.0
    %1263 = vmatprep.subr.mxu0 0.0
    %1264 = vmatpush2.msra.mxu0 0.0
    %1265 = vmatprep.subr.mxu0 0.0
    %1266 = vmatpush2.msra.mxu0 0.0
    %1267 = vmatprep.subr.mxu0 0.0
    %1268 = vmatpush2.msra.mxu0 0.0
    %1269 = vmatprep.subr.mxu0 0.0
    %1270 = vmatpush2.msra.mxu0 0.0
    %1271 = vmatprep.subr.mxu0 0.0
    %1272 = vmatpush2.msra.mxu0 0.0
    %1273 = vmatprep.subr.mxu0 0.0
    %1274 = vmatpush2.msra.mxu0 0.0
    %1275 = vmatprep.subr.mxu0 0.0
    %1276 = vmatpush2.msra.mxu0 0.0
    %1277 = vmatprep.subr.mxu0 0.0
    %1278 = vmatpush2.msra.mxu0 0.0
    %1279 = vmatprep.subr.mxu0 0.0
    %1280 = vmatpush2.msra.mxu0 0.0
    %1281 = vmatprep.mubr.f32.mxu0 0.0
    %v1282 = vand.u32 %v1001, 4294901760
    %1283 = vmatmul.mubr.f32.gmra.mxu0 %v1282
    %v1284 = vpop.f32.mrf.mxu0
    %v1285 = vadd.f32 %v1094, %v1284
    %v1286 = vpop.f32.mrf.mxu0
    %1287 = vmatprep.mubr.f32.mxu0 0.0
    %v1288 = vand.u32 %v1002, 4294901760
    %1289 = vmatmul.mubr.f32.gmra.mxu0 %v1288
    %v1290 = vpop.f32.mrf.mxu0
    %v1291 = vadd.f32 %v1104, %v1290
    %v1292 = vpop.f32.mrf.mxu0
    %1293 = vmatprep.mubr.f32.mxu0 0.0
    %v1294 = vand.u32 %v1003, 4294901760
    %1295 = vmatmul.mubr.f32.gmra.mxu0 %v1294
    %v1296 = vpop.f32.mrf.mxu0
    %v1297 = vadd.f32 %v1114, %v1296
    %v1298 = vpop.f32.mrf.mxu0
    %1299 = vmatprep.mubr.f32.mxu0 0.0
    %v1300 = vand.u32 %v1004, 4294901760
    %1301 = vmatmul.mubr.f32.gmra.mxu0 %v1300
    %v1302 = vpop.f32.mrf.mxu0
    %v1303 = vadd.f32 %v1124, %v1302
    %v1304 = vpop.f32.mrf.mxu0
    %1305 = vmatprep.mubr.f32.mxu0 0.0
    %v1306 = vand.u32 %v1005, 4294901760
    %1307 = vmatmul.mubr.f32.gmra.mxu0 %v1306
    %v1308 = vpop.f32.mrf.mxu0
    %v1309 = vadd.f32 %v1134, %v1308
    %v1310 = vpop.f32.mrf.mxu0
    %1311 = vdwg.mxu0
    %1312 = vmatprep.subr.mxu0 0.0
    %v1313 = vand.u32 %v182, 4294901760
    %v1314 = vsub.f32 %v182, %v1313
    %1315 = vmatpush1.msra.mxu0 %v1314
    %1316 = vmatprep.subr.mxu0 0.0
    %v1317 = vand.u32 %v181, 4294901760
    %v1318 = vsub.f32 %v181, %v1317
    %1319 = vmatpush1.msra.mxu0 %v1318
    %1320 = vmatprep.subr.mxu0 0.0
    %v1321 = vand.u32 %v180, 4294901760
    %v1322 = vsub.f32 %v180, %v1321
    %1323 = vmatpush1.msra.mxu0 %v1322
    %1324 = vmatprep.subr.mxu0 0.0
    %v1325 = vand.u32 %v179, 4294901760
    %v1326 = vsub.f32 %v179, %v1325
    %1327 = vmatpush1.msra.mxu0 %v1326
    %1328 = vmatprep.subr.mxu0 0.0
    %v1329 = vand.u32 %v178, 4294901760
    %v1330 = vsub.f32 %v178, %v1329
    %1331 = vmatpush1.msra.mxu0 %v1330
    %1332 = vmatprep.subr.mxu0 0.0
    %v1333 = vand.u32 %v177, 4294901760
    %v1334 = vsub.f32 %v177, %v1333
    %1335 = vmatpush1.msra.mxu0 %v1334
    %1336 = vmatprep.subr.mxu0 0.0
    %v1337 = vand.u32 %v176, 4294901760
    %v1338 = vsub.f32 %v176, %v1337
    %1339 = vmatpush1.msra.mxu0 %v1338
    %1340 = vmatprep.subr.mxu0 0.0
    %v1341 = vand.u32 %v175, 4294901760
    %v1342 = vsub.f32 %v175, %v1341
    %1343 = vmatpush1.msra.mxu0 %v1342
    %1344 = vmatprep.subr.mxu0 0.0
    %v1345 = vand.u32 %v174, 4294901760
    %v1346 = vsub.f32 %v174, %v1345
    %1347 = vmatpush1.msra.mxu0 %v1346
    %1348 = vmatprep.subr.mxu0 0.0
    %v1349 = vand.u32 %v173, 4294901760
    %v1350 = vsub.f32 %v173, %v1349
    %1351 = vmatpush1.msra.mxu0 %v1350
    %1352 = vmatprep.subr.mxu0 0.0
    %v1353 = vand.u32 %v172, 4294901760
    %v1354 = vsub.f32 %v172, %v1353
    %1355 = vmatpush1.msra.mxu0 %v1354
    %1356 = vmatprep.subr.mxu0 0.0
    %v1357 = vand.u32 %v171, 4294901760
    %v1358 = vsub.f32 %v171, %v1357
    %1359 = vmatpush1.msra.mxu0 %v1358
    %1360 = vmatprep.subr.mxu0 0.0
    %v1361 = vand.u32 %v170, 4294901760
    %v1362 = vsub.f32 %v170, %v1361
    %1363 = vmatpush1.msra.mxu0 %v1362
    %1364 = vmatprep.subr.mxu0 0.0
    %v1365 = vand.u32 %v169, 4294901760
    %v1366 = vsub.f32 %v169, %v1365
    %1367 = vmatpush1.msra.mxu0 %v1366
    %1368 = vmatprep.subr.mxu0 0.0
    %v1369 = vand.u32 %v168, 4294901760
    %v1370 = vsub.f32 %v168, %v1369
    %1371 = vmatpush1.msra.mxu0 %v1370
    %1372 = vmatprep.subr.mxu0 0.0
    %v1373 = vand.u32 %v167, 4294901760
    %v1374 = vsub.f32 %v167, %v1373
    %1375 = vmatpush1.msra.mxu0 %v1374
    %1376 = vmatprep.subr.mxu0 0.0
    %1377 = vmatpush2.msra.mxu0 0.0
    %1378 = vmatprep.subr.mxu0 0.0
    %1379 = vmatpush2.msra.mxu0 0.0
    %1380 = vmatprep.subr.mxu0 0.0
    %1381 = vmatpush2.msra.mxu0 0.0
    %1382 = vmatprep.subr.mxu0 0.0
    %1383 = vmatpush2.msra.mxu0 0.0
    %1384 = vmatprep.subr.mxu0 0.0
    %1385 = vmatpush2.msra.mxu0 0.0
    %1386 = vmatprep.subr.mxu0 0.0
    %1387 = vmatpush2.msra.mxu0 0.0
    %1388 = vmatprep.subr.mxu0 0.0
    %1389 = vmatpush2.msra.mxu0 0.0
    %1390 = vmatprep.subr.mxu0 0.0
    %1391 = vmatpush2.msra.mxu0 0.0
    %1392 = vmatprep.subr.mxu0 0.0
    %1393 = vmatpush2.msra.mxu0 0.0
    %1394 = vmatprep.subr.mxu0 0.0
    %1395 = vmatpush2.msra.mxu0 0.0
    %1396 = vmatprep.subr.mxu0 0.0
    %1397 = vmatpush2.msra.mxu0 0.0
    %1398 = vmatprep.subr.mxu0 0.0
    %1399 = vmatpush2.msra.mxu0 0.0
    %1400 = vmatprep.subr.mxu0 0.0
    %1401 = vmatpush2.msra.mxu0 0.0
    %1402 = vmatprep.subr.mxu0 0.0
    %1403 = vmatpush2.msra.mxu0 0.0
    %1404 = vmatprep.subr.mxu0 0.0
    %1405 = vmatpush2.msra.mxu0 0.0
    %1406 = vmatprep.subr.mxu0 0.0
    %1407 = vmatpush2.msra.mxu0 0.0
    %1408 = vmatprep.mubr.f32.mxu0 0.0
    %v1409 = vand.u32 %v1001, 4294901760
    %v1410 = vsub.f32 %v1001, %v1409
    %1411 = vmatmul.mubr.f32.gmra.mxu0 %v1410
    %v1412 = vpop.f32.mrf.mxu0
    %v1413 = vadd.f32 %v1285, %v1412
    %v1414 = vpop.f32.mrf.mxu0
    %1415 = vmatprep.mubr.f32.mxu0 0.0
    %v1416 = vand.u32 %v1002, 4294901760
    %v1417 = vsub.f32 %v1002, %v1416
    %1418 = vmatmul.mubr.f32.gmra.mxu0 %v1417
    %v1419 = vpop.f32.mrf.mxu0
    %v1420 = vadd.f32 %v1291, %v1419
    %v1421 = vpop.f32.mrf.mxu0
    %1422 = vmatprep.mubr.f32.mxu0 0.0
    %v1423 = vand.u32 %v1003, 4294901760
    %v1424 = vsub.f32 %v1003, %v1423
    %1425 = vmatmul.mubr.f32.gmra.mxu0 %v1424
    %v1426 = vpop.f32.mrf.mxu0
    %v1427 = vadd.f32 %v1297, %v1426
    %v1428 = vpop.f32.mrf.mxu0
    %1429 = vmatprep.mubr.f32.mxu0 0.0
    %v1430 = vand.u32 %v1004, 4294901760
    %v1431 = vsub.f32 %v1004, %v1430
    %1432 = vmatmul.mubr.f32.gmra.mxu0 %v1431
    %v1433 = vpop.f32.mrf.mxu0
    %v1434 = vadd.f32 %v1303, %v1433
    %v1435 = vpop.f32.mrf.mxu0
    %1436 = vmatprep.mubr.f32.mxu0 0.0
    %v1437 = vand.u32 %v1005, 4294901760
    %v1438 = vsub.f32 %v1005, %v1437
    %1439 = vmatmul.mubr.f32.gmra.mxu0 %v1438
    %v1440 = vpop.f32.mrf.mxu0
    %v1441 = vadd.f32 %v1309, %v1440
    %v1442 = vpop.f32.mrf.mxu0
    %1443 = vdwg.mxu0
    %1444 = vmatprep.subr.mxu0 0.0
    %v1445 = vand.u32 %v182, 4294901760
    %1446 = vmatpush1.msra.mxu0 %v1445
    %1447 = vmatprep.subr.mxu0 0.0
    %v1448 = vand.u32 %v181, 4294901760
    %1449 = vmatpush1.msra.mxu0 %v1448
    %1450 = vmatprep.subr.mxu0 0.0
    %v1451 = vand.u32 %v180, 4294901760
    %1452 = vmatpush1.msra.mxu0 %v1451
    %1453 = vmatprep.subr.mxu0 0.0
    %v1454 = vand.u32 %v179, 4294901760
    %1455 = vmatpush1.msra.mxu0 %v1454
    %1456 = vmatprep.subr.mxu0 0.0
    %v1457 = vand.u32 %v178, 4294901760
    %1458 = vmatpush1.msra.mxu0 %v1457
    %1459 = vmatprep.subr.mxu0 0.0
    %v1460 = vand.u32 %v177, 4294901760
    %1461 = vmatpush1.msra.mxu0 %v1460
    %1462 = vmatprep.subr.mxu0 0.0
    %v1463 = vand.u32 %v176, 4294901760
    %1464 = vmatpush1.msra.mxu0 %v1463
    %1465 = vmatprep.subr.mxu0 0.0
    %v1466 = vand.u32 %v175, 4294901760
    %1467 = vmatpush1.msra.mxu0 %v1466
    %1468 = vmatprep.subr.mxu0 0.0
    %v1469 = vand.u32 %v174, 4294901760
    %1470 = vmatpush1.msra.mxu0 %v1469
    %1471 = vmatprep.subr.mxu0 0.0
    %v1472 = vand.u32 %v173, 4294901760
    %1473 = vmatpush1.msra.mxu0 %v1472
    %1474 = vmatprep.subr.mxu0 0.0
    %v1475 = vand.u32 %v172, 4294901760
    %1476 = vmatpush1.msra.mxu0 %v1475
    %1477 = vmatprep.subr.mxu0 0.0
    %v1478 = vand.u32 %v171, 4294901760
    %1479 = vmatpush1.msra.mxu0 %v1478
    %1480 = vmatprep.subr.mxu0 0.0
    %v1481 = vand.u32 %v170, 4294901760
    %1482 = vmatpush1.msra.mxu0 %v1481
    %1483 = vmatprep.subr.mxu0 0.0
    %v1484 = vand.u32 %v169, 4294901760
    %1485 = vmatpush1.msra.mxu0 %v1484
    %1486 = vmatprep.subr.mxu0 0.0
    %v1487 = vand.u32 %v168, 4294901760
    %1488 = vmatpush1.msra.mxu0 %v1487
    %1489 = vmatprep.subr.mxu0 0.0
    %v1490 = vand.u32 %v167, 4294901760
    %1491 = vmatpush1.msra.mxu0 %v1490
    %1492 = vmatprep.subr.mxu0 0.0
    %1493 = vmatpush2.msra.mxu0 0.0
    %1494 = vmatprep.subr.mxu0 0.0
    %1495 = vmatpush2.msra.mxu0 0.0
    %1496 = vmatprep.subr.mxu0 0.0
    %1497 = vmatpush2.msra.mxu0 0.0
    %1498 = vmatprep.subr.mxu0 0.0
    %1499 = vmatpush2.msra.mxu0 0.0
    %1500 = vmatprep.subr.mxu0 0.0
    %1501 = vmatpush2.msra.mxu0 0.0
    %1502 = vmatprep.subr.mxu0 0.0
    %1503 = vmatpush2.msra.mxu0 0.0
    %1504 = vmatprep.subr.mxu0 0.0
    %1505 = vmatpush2.msra.mxu0 0.0
    %1506 = vmatprep.subr.mxu0 0.0
    %1507 = vmatpush2.msra.mxu0 0.0
    %1508 = vmatprep.subr.mxu0 0.0
    %1509 = vmatpush2.msra.mxu0 0.0
    %1510 = vmatprep.subr.mxu0 0.0
    %1511 = vmatpush2.msra.mxu0 0.0
    %1512 = vmatprep.subr.mxu0 0.0
    %1513 = vmatpush2.msra.mxu0 0.0
    %1514 = vmatprep.subr.mxu0 0.0
    %1515 = vmatpush2.msra.mxu0 0.0
    %1516 = vmatprep.subr.mxu0 0.0
    %1517 = vmatpush2.msra.mxu0 0.0
    %1518 = vmatprep.subr.mxu0 0.0
    %1519 = vmatpush2.msra.mxu0 0.0
    %1520 = vmatprep.subr.mxu0 0.0
    %1521 = vmatpush2.msra.mxu0 0.0
    %1522 = vmatprep.subr.mxu0 0.0
    %1523 = vmatpush2.msra.mxu0 0.0
    %1524 = vmatprep.mubr.f32.mxu0 0.0
    %v1525 = vand.u32 %v1001, 4294901760
    %v1526 = vsub.f32 %v1001, %v1525
    %v1527 = vand.u32 %v1526, 4294901760
    %1528 = vmatmul.mubr.f32.gmra.mxu0 %v1527
    %v1529 = vpop.f32.mrf.mxu0
    %v1530 = vadd.f32 %v1413, %v1529
    %v1531 = vpop.f32.mrf.mxu0
    %1532 = vmatprep.mubr.f32.mxu0 0.0
    %v1533 = vand.u32 %v1002, 4294901760
    %v1534 = vsub.f32 %v1002, %v1533
    %v1535 = vand.u32 %v1534, 4294901760
    %1536 = vmatmul.mubr.f32.gmra.mxu0 %v1535
    %v1537 = vpop.f32.mrf.mxu0
    %v1538 = vadd.f32 %v1420, %v1537
    %v1539 = vpop.f32.mrf.mxu0
    %1540 = vmatprep.mubr.f32.mxu0 0.0
    %v1541 = vand.u32 %v1003, 4294901760
    %v1542 = vsub.f32 %v1003, %v1541
    %v1543 = vand.u32 %v1542, 4294901760
    %1544 = vmatmul.mubr.f32.gmra.mxu0 %v1543
    %v1545 = vpop.f32.mrf.mxu0
    %v1546 = vadd.f32 %v1427, %v1545
    %v1547 = vpop.f32.mrf.mxu0
    %1548 = vmatprep.mubr.f32.mxu0 0.0
    %v1549 = vand.u32 %v1004, 4294901760
    %v1550 = vsub.f32 %v1004, %v1549
    %v1551 = vand.u32 %v1550, 4294901760
    %1552 = vmatmul.mubr.f32.gmra.mxu0 %v1551
    %v1553 = vpop.f32.mrf.mxu0
    %v1554 = vadd.f32 %v1434, %v1553
    %v1555 = vpop.f32.mrf.mxu0
    %1556 = vmatprep.mubr.f32.mxu0 0.0
    %v1557 = vand.u32 %v1005, 4294901760
    %v1558 = vsub.f32 %v1005, %v1557
    %v1559 = vand.u32 %v1558, 4294901760
    %1560 = vmatmul.mubr.f32.gmra.mxu0 %v1559
    %v1561 = vpop.f32.mrf.mxu0
    %v1562 = vadd.f32 %v1441, %v1561
    %v1563 = vpop.f32.mrf.mxu0
    %1564 = vdwg.mxu0
    %1565 = vmatprep.subr.mxu0 0.0
    %v1566 = vand.u32 %v182, 4294901760
    %v1567 = vsub.f32 %v182, %v1566
    %v1568 = vand.u32 %v1567, 4294901760
    %1569 = vmatpush1.msra.mxu0 %v1568
    %1570 = vmatprep.subr.mxu0 0.0
    %v1571 = vand.u32 %v181, 4294901760
    %v1572 = vsub.f32 %v181, %v1571
    %v1573 = vand.u32 %v1572, 4294901760
    %1574 = vmatpush1.msra.mxu0 %v1573
    %1575 = vmatprep.subr.mxu0 0.0
    %v1576 = vand.u32 %v180, 4294901760
    %v1577 = vsub.f32 %v180, %v1576
    %v1578 = vand.u32 %v1577, 4294901760
    %1579 = vmatpush1.msra.mxu0 %v1578
    %1580 = vmatprep.subr.mxu0 0.0
    %v1581 = vand.u32 %v179, 4294901760
    %v1582 = vsub.f32 %v179, %v1581
    %v1583 = vand.u32 %v1582, 4294901760
    %1584 = vmatpush1.msra.mxu0 %v1583
    %1585 = vmatprep.subr.mxu0 0.0
    %v1586 = vand.u32 %v178, 4294901760
    %v1587 = vsub.f32 %v178, %v1586
    %v1588 = vand.u32 %v1587, 4294901760
    %1589 = vmatpush1.msra.mxu0 %v1588
    %1590 = vmatprep.subr.mxu0 0.0
    %v1591 = vand.u32 %v177, 4294901760
    %v1592 = vsub.f32 %v177, %v1591
    %v1593 = vand.u32 %v1592, 4294901760
    %1594 = vmatpush1.msra.mxu0 %v1593
    %1595 = vmatprep.subr.mxu0 0.0
    %v1596 = vand.u32 %v176, 4294901760
    %v1597 = vsub.f32 %v176, %v1596
    %v1598 = vand.u32 %v1597, 4294901760
    %1599 = vmatpush1.msra.mxu0 %v1598
    %1600 = vmatprep.subr.mxu0 0.0
    %v1601 = vand.u32 %v175, 4294901760
    %v1602 = vsub.f32 %v175, %v1601
    %v1603 = vand.u32 %v1602, 4294901760
    %1604 = vmatpush1.msra.mxu0 %v1603
    %1605 = vmatprep.subr.mxu0 0.0
    %v1606 = vand.u32 %v174, 4294901760
    %v1607 = vsub.f32 %v174, %v1606
    %v1608 = vand.u32 %v1607, 4294901760
    %1609 = vmatpush1.msra.mxu0 %v1608
    %1610 = vmatprep.subr.mxu0 0.0
    %v1611 = vand.u32 %v173, 4294901760
    %v1612 = vsub.f32 %v173, %v1611
    %v1613 = vand.u32 %v1612, 4294901760
    %1614 = vmatpush1.msra.mxu0 %v1613
    %1615 = vmatprep.subr.mxu0 0.0
    %v1616 = vand.u32 %v172, 4294901760
    %v1617 = vsub.f32 %v172, %v1616
    %v1618 = vand.u32 %v1617, 4294901760
    %1619 = vmatpush1.msra.mxu0 %v1618
    %1620 = vmatprep.subr.mxu0 0.0
    %v1621 = vand.u32 %v171, 4294901760
    %v1622 = vsub.f32 %v171, %v1621
    %v1623 = vand.u32 %v1622, 4294901760
    %1624 = vmatpush1.msra.mxu0 %v1623
    %1625 = vmatprep.subr.mxu0 0.0
    %v1626 = vand.u32 %v170, 4294901760
    %v1627 = vsub.f32 %v170, %v1626
    %v1628 = vand.u32 %v1627, 4294901760
    %1629 = vmatpush1.msra.mxu0 %v1628
    %1630 = vmatprep.subr.mxu0 0.0
    %v1631 = vand.u32 %v169, 4294901760
    %v1632 = vsub.f32 %v169, %v1631
    %v1633 = vand.u32 %v1632, 4294901760
    %1634 = vmatpush1.msra.mxu0 %v1633
    %1635 = vmatprep.subr.mxu0 0.0
    %v1636 = vand.u32 %v168, 4294901760
    %v1637 = vsub.f32 %v168, %v1636
    %v1638 = vand.u32 %v1637, 4294901760
    %1639 = vmatpush1.msra.mxu0 %v1638
    %1640 = vmatprep.subr.mxu0 0.0
    %v1641 = vand.u32 %v167, 4294901760
    %v1642 = vsub.f32 %v167, %v1641
    %v1643 = vand.u32 %v1642, 4294901760
    %1644 = vmatpush1.msra.mxu0 %v1643
    %1645 = vmatprep.subr.mxu0 0.0
    %1646 = vmatpush2.msra.mxu0 0.0
    %1647 = vmatprep.subr.mxu0 0.0
    %1648 = vmatpush2.msra.mxu0 0.0
    %1649 = vmatprep.subr.mxu0 0.0
    %1650 = vmatpush2.msra.mxu0 0.0
    %1651 = vmatprep.subr.mxu0 0.0
    %1652 = vmatpush2.msra.mxu0 0.0
    %1653 = vmatprep.subr.mxu0 0.0
    %1654 = vmatpush2.msra.mxu0 0.0
    %1655 = vmatprep.subr.mxu0 0.0
    %1656 = vmatpush2.msra.mxu0 0.0
    %1657 = vmatprep.subr.mxu0 0.0
    %1658 = vmatpush2.msra.mxu0 0.0
    %1659 = vmatprep.subr.mxu0 0.0
    %1660 = vmatpush2.msra.mxu0 0.0
    %1661 = vmatprep.subr.mxu0 0.0
    %1662 = vmatpush2.msra.mxu0 0.0
    %1663 = vmatprep.subr.mxu0 0.0
    %1664 = vmatpush2.msra.mxu0 0.0
    %1665 = vmatprep.subr.mxu0 0.0
    %1666 = vmatpush2.msra.mxu0 0.0
    %1667 = vmatprep.subr.mxu0 0.0
    %1668 = vmatpush2.msra.mxu0 0.0
    %1669 = vmatprep.subr.mxu0 0.0
    %1670 = vmatpush2.msra.mxu0 0.0
    %1671 = vmatprep.subr.mxu0 0.0
    %1672 = vmatpush2.msra.mxu0 0.0
    %1673 = vmatprep.subr.mxu0 0.0
    %1674 = vmatpush2.msra.mxu0 0.0
    %1675 = vmatprep.subr.mxu0 0.0
    %1676 = vmatpush2.msra.mxu0 0.0
    %1677 = vmatprep.mubr.f32.mxu0 0.0
    %v1678 = vand.u32 %v1001, 4294901760
    %1679 = vmatmul.mubr.f32.gmra.mxu0 %v1678
    %v1680 = vpop.f32.mrf.mxu0
    %v1681 = vadd.f32 %v1530, %v1680
    %v1682 = vpop.f32.mrf.mxu0
    %1683 = vmatprep.mubr.f32.mxu0 0.0
    %v1684 = vand.u32 %v1002, 4294901760
    %1685 = vmatmul.mubr.f32.gmra.mxu0 %v1684
    %v1686 = vpop.f32.mrf.mxu0
    %v1687 = vadd.f32 %v1538, %v1686
    %v1688 = vpop.f32.mrf.mxu0
    %1689 = vmatprep.mubr.f32.mxu0 0.0
    %v1690 = vand.u32 %v1003, 4294901760
    %1691 = vmatmul.mubr.f32.gmra.mxu0 %v1690
    %v1692 = vpop.f32.mrf.mxu0
    %v1693 = vadd.f32 %v1546, %v1692
    %v1694 = vpop.f32.mrf.mxu0
    %1695 = vmatprep.mubr.f32.mxu0 0.0
    %v1696 = vand.u32 %v1004, 4294901760
    %1697 = vmatmul.mubr.f32.gmra.mxu0 %v1696
    %v1698 = vpop.f32.mrf.mxu0
    %v1699 = vadd.f32 %v1554, %v1698
    %v1700 = vpop.f32.mrf.mxu0
    %1701 = vmatprep.mubr.f32.mxu0 0.0
    %v1702 = vand.u32 %v1005, 4294901760
    %1703 = vmatmul.mubr.f32.gmra.mxu0 %v1702
    %v1704 = vpop.f32.mrf.mxu0
    %v1705 = vadd.f32 %v1562, %v1704
    %v1706 = vpop.f32.mrf.mxu0
    %1707 = vdwg.mxu0
    %1708 = vmatprep.subr.mxu0 0.0
    %v1709 = vand.u32 %v182, 4294901760
    %1710 = vmatpush1.msra.mxu0 %v1709
    %1711 = vmatprep.subr.mxu0 0.0
    %v1712 = vand.u32 %v181, 4294901760
    %1713 = vmatpush1.msra.mxu0 %v1712
    %1714 = vmatprep.subr.mxu0 0.0
    %v1715 = vand.u32 %v180, 4294901760
    %1716 = vmatpush1.msra.mxu0 %v1715
    %1717 = vmatprep.subr.mxu0 0.0
    %v1718 = vand.u32 %v179, 4294901760
    %1719 = vmatpush1.msra.mxu0 %v1718
    %1720 = vmatprep.subr.mxu0 0.0
    %v1721 = vand.u32 %v178, 4294901760
    %1722 = vmatpush1.msra.mxu0 %v1721
    %1723 = vmatprep.subr.mxu0 0.0
    %v1724 = vand.u32 %v177, 4294901760
    %1725 = vmatpush1.msra.mxu0 %v1724
    %1726 = vmatprep.subr.mxu0 0.0
    %v1727 = vand.u32 %v176, 4294901760
    %1728 = vmatpush1.msra.mxu0 %v1727
    %1729 = vmatprep.subr.mxu0 0.0
    %v1730 = vand.u32 %v175, 4294901760
    %1731 = vmatpush1.msra.mxu0 %v1730
    %1732 = vmatprep.subr.mxu0 0.0
    %v1733 = vand.u32 %v174, 4294901760
    %1734 = vmatpush1.msra.mxu0 %v1733
    %1735 = vmatprep.subr.mxu0 0.0
    %v1736 = vand.u32 %v173, 4294901760
    %1737 = vmatpush1.msra.mxu0 %v1736
    %1738 = vmatprep.subr.mxu0 0.0
    %v1739 = vand.u32 %v172, 4294901760
    %1740 = vmatpush1.msra.mxu0 %v1739
    %1741 = vmatprep.subr.mxu0 0.0
    %v1742 = vand.u32 %v171, 4294901760
    %1743 = vmatpush1.msra.mxu0 %v1742
    %1744 = vmatprep.subr.mxu0 0.0
    %v1745 = vand.u32 %v170, 4294901760
    %1746 = vmatpush1.msra.mxu0 %v1745
    %1747 = vmatprep.subr.mxu0 0.0
    %v1748 = vand.u32 %v169, 4294901760
    %1749 = vmatpush1.msra.mxu0 %v1748
    %1750 = vmatprep.subr.mxu0 0.0
    %v1751 = vand.u32 %v168, 4294901760
    %1752 = vmatpush1.msra.mxu0 %v1751
    %1753 = vmatprep.subr.mxu0 0.0
    %v1754 = vand.u32 %v167, 4294901760
    %1755 = vmatpush1.msra.mxu0 %v1754
    %1756 = vmatprep.subr.mxu0 0.0
    %1757 = vmatpush2.msra.mxu0 0.0
    %1758 = vmatprep.subr.mxu0 0.0
    %1759 = vmatpush2.msra.mxu0 0.0
    %1760 = vmatprep.subr.mxu0 0.0
    %1761 = vmatpush2.msra.mxu0 0.0
    %1762 = vmatprep.subr.mxu0 0.0
    %1763 = vmatpush2.msra.mxu0 0.0
    %1764 = vmatprep.subr.mxu0 0.0
    %1765 = vmatpush2.msra.mxu0 0.0
    %1766 = vmatprep.subr.mxu0 0.0
    %1767 = vmatpush2.msra.mxu0 0.0
    %1768 = vmatprep.subr.mxu0 0.0
    %1769 = vmatpush2.msra.mxu0 0.0
    %1770 = vmatprep.subr.mxu0 0.0
    %1771 = vmatpush2.msra.mxu0 0.0
    %1772 = vmatprep.subr.mxu0 0.0
    %1773 = vmatpush2.msra.mxu0 0.0
    %1774 = vmatprep.subr.mxu0 0.0
    %1775 = vmatpush2.msra.mxu0 0.0
    %1776 = vmatprep.subr.mxu0 0.0
    %1777 = vmatpush2.msra.mxu0 0.0
    %1778 = vmatprep.subr.mxu0 0.0
    %1779 = vmatpush2.msra.mxu0 0.0
    %1780 = vmatprep.subr.mxu0 0.0
    %1781 = vmatpush2.msra.mxu0 0.0
    %1782 = vmatprep.subr.mxu0 0.0
    %1783 = vmatpush2.msra.mxu0 0.0
    %1784 = vmatprep.subr.mxu0 0.0
    %1785 = vmatpush2.msra.mxu0 0.0
    %1786 = vmatprep.subr.mxu0 0.0
    %1787 = vmatpush2.msra.mxu0 0.0
    %1788 = vmatprep.mubr.f32.mxu0 0.0
    %v1789 = vand.u32 %v1001, 4294901760
    %1790 = vmatmul.mubr.f32.gmra.mxu0 %v1789
    %v1791 = vpop.f32.mrf.mxu0
    %v1792 = vadd.f32 %v1681, %v1791
    %v1793 = vpop.f32.mrf.mxu0
    %1794 = vmatprep.mubr.f32.mxu0 0.0
    %v1795 = vand.u32 %v1002, 4294901760
    %1796 = vmatmul.mubr.f32.gmra.mxu0 %v1795
    %v1797 = vpop.f32.mrf.mxu0
    %v1798 = vadd.f32 %v1687, %v1797
    %v1799 = vpop.f32.mrf.mxu0
    %1800 = vmatprep.mubr.f32.mxu0 0.0
    %v1801 = vand.u32 %v1003, 4294901760
    %1802 = vmatmul.mubr.f32.gmra.mxu0 %v1801
    %v1803 = vpop.f32.mrf.mxu0
    %v1804 = vadd.f32 %v1693, %v1803
    %v1805 = vpop.f32.mrf.mxu0
    %1806 = vmatprep.mubr.f32.mxu0 0.0
    %v1807 = vand.u32 %v1004, 4294901760
    %1808 = vmatmul.mubr.f32.gmra.mxu0 %v1807
    %v1809 = vpop.f32.mrf.mxu0
    %v1810 = vadd.f32 %v1699, %v1809
    %v1811 = vpop.f32.mrf.mxu0
    %1812 = vmatprep.mubr.f32.mxu0 0.0
    %v1813 = vand.u32 %v1005, 4294901760
    %1814 = vmatmul.mubr.f32.gmra.mxu0 %v1813
    %v1815 = vpop.f32.mrf.mxu0
    %v1816 = vadd.f32 %v1705, %v1815
    %v1817 = vpop.f32.mrf.mxu0
    %1818 = vdwg.mxu0
    %v1819 = vmul.f32 %v974, %v1792
    %v1820 = vmul.f32 %v980, %v1798
    %v1821 = vmul.f32 %v986, %v1804
    %v1822 = vmul.f32 %v992, %v1810
    %v1823 = vmul.f32 %v998, %v1816
    %v1824 = vadd.f32 %v1819, %v1820
    %v1825 = vadd.f32 %v1824, %v1821
    %v1826 = vadd.f32 %v1825, %v1822
    %vm1827 = vcmask 1040384
    %v1828 = vsel %vm1827, %v1823, 0.0
    %v1829 = vadd.f32 %v1826, %v1828
    %v1830 = vrot.slane %v1829, 4
    %v1831 = vadd.f32 %v1829, %v1830
    %v1832 = vrot.slane %v1831, 2
    %v1833 = vadd.f32 %v1831, %v1832
    %v1834 = vrot.slane %v1833, 1
    %v1835 = vadd.f32 %v1833, %v1834
    %v1836 = vld [vmem:[%s2] sm:$0x1]
    %v1837 = vand.u32 2147483647, %v1835
    %v1838 = vsub.f32 0.0, %v1837
    %v1839 = vmul.f32 %v1838, 1.442695
    %v1840 = vpow.pop %v1839
    %v1841 = vadd.f32 %v1840, 1.0
    %vm1842 = vcmp.eq.f32.partialorder %v1841, 1.0
    %v1843 = vsub.f32 %v1841, 1.0
    %v1844 = vsel %vm1842, 1.0, %v1843
    %v1845 = vlog2.pop %v1841
    %v1846 = vmul.f32 %v1845, 0.6931472
    %v1847 = vmul.f32 %v1846, %v1840
    %v1848 = vrcp.pop %v1844
    %v1849 = vmul.f32 %v1847, %v1848
    %v1850 = vsel %vm1842, %v1840, %v1849
    %v1851 = vmax.f32 %v1835, 0.0
    %v1852 = vmul.f32 %v1835, %v1836
    %v1853 = vsub.f32 %v1851, %v1852
    %v1854 = vadd.f32 %v1853, %v1850
    %1855 = vst [vmem:[#allocation8] sm:$0x1] %v1854
    // Predicated region
    $region34: #{tpu_custom_call.1} parent=1 // pred_check
      _
    $region35: #{tpu_custom_call.1} parent=1 // pred_check_branch
      %1857 = sbr.rel (0) target = $region37
    $region36: #{tpu_custom_call.1} parent=1 // pred_region
      %s1859 = ssub.s32 16, 16
      %1860 = vsyncadd [#allocation4], %s1859
      %s1862 = sshll.u32 [#allocation8], 4
      %s1863 = int_to_ptr.vmem [resolvable:$true] %s1862
      %1865 = dma.vmem_to_hbm [thread:$0]  %s1863, 16, %s5, [#allocation4]
    $region37: #{tpu_custom_call.1} parent=1 // pred_fallthru
      _
    // Predicated region
    $region38: #{tpu_custom_call.1} parent=1 // pred_check
      _
    $region39: #{tpu_custom_call.1} parent=1 // pred_check_branch
      %1867 = sbr.rel (0) target = $region41
    $region40: #{tpu_custom_call.1} parent=1 // pred_region
      %1868 = dma.done [#allocation4], 16
    $region41: #{tpu_custom_call.1} parent=1 // pred_fallthru
      _
    %1869 = vsyncpa [#allocation3], 1
    %1870 = vsyncpa [#allocation6], 1
    %1871 = vsyncpa [#allocation4], 1

</llo_original>
